<compile_context>
chip_gen: v5e
topology: v5e:2x2
jax: 0.10.0
libtpu: 0.0.40
codegen_flags: <defaults>
</compile_context>

<pallas_src>
import jax
import jax.numpy as jnp
from jax.experimental import pallas as pl
from jax.experimental.pallas import tpu as pltpu


# ----------------------------------------------------------------------------
# Fused Pallas kernel (B_TILE batch rows per grid step, batch-interleaved rows)
# ----------------------------------------------------------------------------
def _make_fused_tcn_kernel(layer_cfgs, kernel_size, b_tile, l_final, c_out,
                           n_out, compute_dtype):
    """Kernel body for a fixed (static) TCN configuration.

    Ref order:
      x_ref,
      w_ref * num_layers,
      bss_ref (n_layers, 3, C_out),
      proj_w_ref, proj_b_ref,
      o_ref,
      xs_ref (shared im2col scratch), pj_ref (projection staging scratch)

    Activation layout: 2-D (l * B_TILE + b, channel)  -- batch interleaved.
    """
    K = kernel_size
    n_layers = len(layer_cfgs)
    bt = b_tile

    def kernel(*refs):
        x_ref = refs[0]
        w_refs = refs[1:1 + n_layers]
        bss_ref = refs[1 + n_layers]      # (n_layers, 3, C_out)  f32
        wp_ref = refs[2 + n_layers]       # (l_final*C_out, n_out)
        pb_ref = refs[3 + n_layers]       # (1, n_out)            f32
        o_ref = refs[4 + n_layers]        # (bt, n_out)
        xs_ref = refs[5 + n_layers]       # im2col scratch
        pj_ref = refs[6 + n_layers]       # projection staging scratch

        # Current activation for this batch tile: (l_in*bt, C_in), row = l*bt + b.
        h = x_ref[0].astype(compute_dtype)

        for i, cfg in enumerate(layer_cfgs):
            c_in, l_in, l_out, d = (cfg["c_in"], cfg["l_in"],
                                    cfg["l_out"], cfg["dilation"])
            rows_out = l_out * bt

            # Zero-padded im2col built from aligned contiguous block stores:
            #   xs[(l, b), k*C_in + c] = x_pad[(l + k*d), b, c],  pad = (K-1)*d
            # Only the pad slivers are zeroed (every read cell is written each step).
            for k in range(K):
                r0 = (K - 1 - k) * d            # leading pad rows (in l units)
                tail = k * d                    # trailing pad rows
                col0, col1 = k * c_in, (k + 1) * c_in
                if r0 > 0:
                    xs_ref[0:r0 * bt, col0:col1] = jnp.zeros(
                        (r0 * bt, c_in), compute_dtype)
                if tail > 0:
                    xs_ref[(r0 + l_in) * bt:rows_out, col0:col1] = jnp.zeros(
                        (tail * bt, c_in), compute_dtype)
                xs_ref[r0 * bt:(r0 + l_in) * bt, col0:col1] = h

            # One matmul per layer: (l_out*bt, K*C_in) @ (K*C_in, C_out), f32 acc.
            a = jnp.dot(xs_ref[0:rows_out, 0:K * c_in], w_refs[i][...],
                        preferred_element_type=jnp.float32)
            bss = bss_ref[i]                               # (3, C_out) f32
            a = jnp.maximum(a + bss[0:1, :], 0.0)          # conv bias + ReLU (f32)
            h32 = a * bss[1:2, :] + bss[2:3, :]            # BatchNorm1d (eval, f32)
            h = h32.astype(compute_dtype)
            # TODO(synk): training-mode Dropout / batch-statistics BatchNorm not
            # implemented (inference semantics only).

        # Flatten in torch's (c*L + l) order is handled by the pre-arranged weight;
        # here we only stage (bt, l_final*C_out) with aligned (bt, C_out) block
        # stores, then do ONE projection matmul.
        for l in range(l_final):
            pj_ref[:, l * c_out:(l + 1) * c_out] = h[l * bt:(l + 1) * bt, :]
        out = jnp.dot(pj_ref[...], wp_ref[...],
                      preferred_element_type=jnp.float32)
        o_ref[...] = (out + pb_ref[...]).astype(o_ref.dtype)

    return kernel


def tcn_block_forward(prepared, x, *, b_tile=8):
    """x: (B, L, input_dim) channels-last (torch module permutes to NCL itself)."""
    B, l0, c0 = x.shape
    cfgs = prepared["layer_cfgs"]
    K = prepared["kernel_size"]
    c_out = prepared["output_dim"]
    n_out = prepared["output_dim"]
    l_final = cfgs[-1]["l_out"]
    cdt = prepared["compute_dtype"]

    bt = b_tile                       # multiple of 8 -> aligned stores, valid blocks
    b_pad = ((B + bt - 1) // bt) * bt
    if b_pad != B:
        x = jnp.pad(x, ((0, b_pad - B), (0, 0), (0, 0)))
    nt = b_pad // bt
    # Batch-interleaved layout (wrapper-side XLA ops, outside the kernel):
    #   x3[t, l*bt + j, c] = x[t*bt + j, l, c]
    x3 = x.reshape(nt, bt, l0, c0).transpose(0, 2, 1, 3).reshape(nt, l0 * bt, c0)

    def const_spec(arr):
        return pl.BlockSpec(arr.shape, lambda t, _n=arr.ndim: (0,) * _n)

    args = [x3]
    in_specs = [pl.BlockSpec((1, l0 * bt, c0), lambda t: (t, 0, 0))]
    for w in prepared["conv_w"]:
        args.append(w)
        in_specs.append(const_spec(w))
    for arr in (prepared["bss"], prepared["proj_w"], prepared["proj_b"]):
        args.append(arr)
        in_specs.append(const_spec(arr))

    max_rows = max(cfg["l_out"] for cfg in cfgs) * bt
    max_cols = K * max(cfg["c_in"] for cfg in cfgs)
    scratch_shapes = [
        pltpu.VMEM((max_rows, max_cols), cdt),     # shared im2col scratch
        pltpu.VMEM((bt, l_final * c_out), cdt),    # projection staging
    ]

    kernel = _make_fused_tcn_kernel(cfgs, K, bt, l_final, c_out, n_out, cdt)

    out = pl.pallas_call(
        kernel,
        out_shape=jax.ShapeDtypeStruct((b_pad, n_out), x.dtype),
        grid_spec=pltpu.PrefetchScalarGridSpec(
            num_scalar_prefetch=0,
            grid=(nt,),
            in_specs=in_specs,
            out_specs=pl.BlockSpec((bt, n_out), lambda t: (t, 0)),
            scratch_shapes=scratch_shapes),
        compiler_params=pltpu.CompilerParams(
            dimension_semantics=("parallel",),
            vmem_limit_bytes=64 * 1024 * 1024),
    )(*args)
    return out[:B]


# ----------------------------------------------------------------------------
# Parameter init (torch layouts) + one-time rearrangement into kernel layouts
# ----------------------------------------------------------------------------
def init_tcn_params(key, input_dim, output_dim, kernel_size, num_layers,
                    sequence_length):
    params = {"convs": []}
    l = sequence_length
    for i in range(num_layers):
        in_ch = input_dim if i == 0 else output_dim
        d = 2 ** i
        key, kw, kb = jax.random.split(key, 3)
        bound = 1.0 / jnp.sqrt(in_ch * kernel_size)
        params["convs"].append({
            # PyTorch Conv1d weight layout: (out_ch, in_ch, K)
            "w": jax.random.uniform(kw, (output_dim, in_ch, kernel_size),
                                    jnp.float32, -bound, bound),
            "b": jax.random.uniform(kb, (output_dim,), jnp.float32, -bound, bound),
            # BatchNorm1d defaults
            "gamma": jnp.ones((output_dim,), jnp.float32),
            "beta": jnp.zeros((output_dim,), jnp.float32),
            "running_mean": jnp.zeros((output_dim,), jnp.float32),
            "running_var": jnp.ones((output_dim,), jnp.float32),
            "dilation": d,
        })
        # L_out = L + 2*pad - d*(K-1), pad = (K-1)*d  =>  L + (K-1)*d
        l = l + (kernel_size - 1) * d
    flat = output_dim * l
    key, kw, kb = jax.random.split(key, 3)
    bound = 1.0 / jnp.sqrt(flat)
    params["proj_w"] = jax.random.uniform(kw, (output_dim, flat),
                                          jnp.float32, -bound, bound)
    params["proj_b"] = jax.random.uniform(kb, (output_dim,),
                                          jnp.float32, -bound, bound)
    return params


def prepare_tcn_params(params, input_dim, output_dim, kernel_size, num_layers,
                       sequence_length, eps=1e-5, compute_dtype=jnp.float32):
    """One-time layout rearrangement + BN(eval) folding into kernel-ready arrays."""
    layer_cfgs, conv_w, bss_rows = [], [], []
    l = sequence_length
    for i, lyr in enumerate(params["convs"]):
        in_ch = input_dim if i == 0 else output_dim
        d = lyr["dilation"]
        l_out = l + (kernel_size - 1) * d
        layer_cfgs.append({"c_in": in_ch, "l_in": l, "l_out": l_out, "dilation": d})
        # (C_out, C_in, K) -> (K, C_in, C_out) -> (K*C_in, C_out)
        w_r = jnp.transpose(lyr["w"], (2, 1, 0)).reshape(kernel_size * in_ch,
                                                         output_dim)
        conv_w.append(w_r.astype(compute_dtype))
        scale = lyr["gamma"] / jnp.sqrt(lyr["running_var"] + eps)
        shift = lyr["beta"] - lyr["running_mean"] * scale
        bss_rows.append(jnp.stack([lyr["b"], scale, shift], axis=0))  # (3, C_out)
        l = l_out
    bss = jnp.stack(bss_rows, axis=0).astype(jnp.float32)  # (n_layers, 3, C_out)
    # torch flatten(start_dim=1) on (B, C, L): flat index = c*L + l.
    # Kernel flat index = l*C + c  =>  wp[l*C + c, o] = W[o, c*L + l]
    wp = jnp.transpose(params["proj_w"].reshape(output_dim, output_dim, l),
                       (2, 1, 0)).reshape(l * output_dim, output_dim)
    return {
        "conv_w": conv_w,
        "bss": bss,
        "proj_w": wp.astype(compute_dtype),
        "proj_b": params["proj_b"][None, :].astype(jnp.float32),
        "layer_cfgs": layer_cfgs,
        "kernel_size": kernel_size,
        "output_dim": output_dim,
        "compute_dtype": compute_dtype,
    }


# ----------------------------------------------------------------------------
# Pure-JAX reference (independent NCL formulation) for a correctness check
# ----------------------------------------------------------------------------
def _reference_forward(params, x, *, kernel_size, eps=1e-5):
    h = jnp.transpose(x, (0, 2, 1))                      # (B, C_in, L)
    for lyr in params["convs"]:
        d = lyr["dilation"]
        pad = (kernel_size - 1) * d
        hp = jnp.pad(h, ((0, 0), (0, 0), (pad, pad)))
        l_out = hp.shape[-1] - d * (kernel_size - 1)
        w = lyr["w"]                                     # (C_out, C_in, K)
        out = jnp.zeros((hp.shape[0], w.shape[0], l_out), jnp.float32)
        for k in range(kernel_size):
            out = out + jnp.einsum("bcl,oc->bol",
                                   hp[:, :, k * d:k * d + l_out], w[:, :, k])
        out = out + lyr["b"][None, :, None]
        out = jnp.maximum(out, 0.0)
        scale = lyr["gamma"] / jnp.sqrt(lyr["running_var"] + eps)
        shift = lyr["beta"] - lyr["running_mean"] * scale
        h = out * scale[None, :, None] + shift[None, :, None]
    flat = h.reshape(h.shape[0], -1)                     # torch flatten (c*L + l)
    return flat @ params["proj_w"].T + params["proj_b"]


# ----------------------------------------------------------------------------
if __name__ == "__main__":
    input_dim, output_dim = 4, 8
    kernel_size, num_layers = 3, 2
    seq_len = 16

    key = jax.random.PRNGKey(0)
    key, pkey, xkey, xkey2 = jax.random.split(key, 4)
    params = init_tcn_params(pkey, input_dim, output_dim, kernel_size,
                             num_layers, seq_len)

    # --- f32 path, small batch, tight check -------------------------------
    batch = 2
    x = jax.random.normal(xkey, (batch, seq_len, input_dim), jnp.float32)
    prep32 = prepare_tcn_params(params, input_dim, output_dim, kernel_size,
                                num_layers, seq_len, compute_dtype=jnp.float32)
    out32 = jax.block_until_ready(tcn_block_forward(prep32, x))
    ref32 = _reference_forward(params, x, kernel_size=kernel_size)
    assert out32.shape == (batch, output_dim), out32.shape
    assert bool(jnp.all(jnp.isfinite(out32)))
    assert jnp.allclose(out32, ref32, rtol=1e-4, atol=1e-4), (
        float(jnp.max(jnp.abs(out32 - ref32))))

    # --- bf16 MXU path, larger batch (exercises grid > 1 + padding) -------
    batch2 = 12
    x2 = jax.random.normal(xkey2, (batch2, seq_len, input_dim), jnp.float32)
    prep16 = prepare_tcn_params(params, input_dim, output_dim, kernel_size,
                                num_layers, seq_len, compute_dtype=jnp.bfloat16)
    out16 = jax.block_until_ready(tcn_block_forward(prep16, x2))
    ref16 = _reference_forward(params, x2, kernel_size=kernel_size)
    assert out16.shape == (batch2, output_dim), out16.shape
    assert bool(jnp.all(jnp.isfinite(out16)))
    assert jnp.allclose(out16, ref16, rtol=5e-2, atol=5e-2), (
        float(jnp.max(jnp.abs(out16 - ref16))))

    print("KERNEL_OK")
</pallas_src>

<mosaic_0001>
module attributes {stable_mosaic.version = 11 : i64} {
  func.func @kernel(%arg0: i32, %arg1: memref<1x128x4xf32, #tpu.memory_space<vmem>>, %arg2: memref<12x8xf32, #tpu.memory_space<vmem>>, %arg3: memref<24x8xf32, #tpu.memory_space<vmem>>, %arg4: memref<2x3x8xf32, #tpu.memory_space<vmem>>, %arg5: memref<176x8xf32, #tpu.memory_space<vmem>>, %arg6: memref<1x8xf32, #tpu.memory_space<vmem>>, %arg7: memref<8x8xf32, #tpu.memory_space<vmem>>, %arg8: memref<176x24xf32, #tpu.memory_space<vmem>>, %arg9: memref<8x176xf32, #tpu.memory_space<vmem>>) attributes {dimension_semantics = [#tpu.dimension_semantics<parallel>], iteration_bounds = array<i64: 1>, scalar_prefetch = 0 : i64, scratch_operands = 2 : i64, tpu.core_type = #tpu.core_type<tc>, window_params = [{transform_indices = @transform_0, window_bounds = array<i64: 1, 128, 4>}, {pipeline_mode = #tpu.pipeline_mode<synchronous>, transform_indices = @transform_1, window_bounds = array<i64: 12, 8>}, {pipeline_mode = #tpu.pipeline_mode<synchronous>, transform_indices = @transform_2, window_bounds = array<i64: 24, 8>}, {pipeline_mode = #tpu.pipeline_mode<synchronous>, transform_indices = @transform_3, window_bounds = array<i64: 2, 3, 8>}, {pipeline_mode = #tpu.pipeline_mode<synchronous>, transform_indices = @transform_4, window_bounds = array<i64: 176, 8>}, {pipeline_mode = #tpu.pipeline_mode<synchronous>, transform_indices = @transform_5, window_bounds = array<i64: 1, 8>}, {transform_indices = @transform_6, window_bounds = array<i64: 8, 8>}]} {
    %c0 = arith.constant 0 : index
    %c0_0 = arith.constant 0 : index
    %c0_1 = arith.constant 0 : index
    %0 = vector.load %arg1[%c0, %c0_0, %c0_1] : memref<1x128x4xf32, #tpu.memory_space<vmem>>, vector<1x128x4xf32>
    %1 = vector.shape_cast %0 : vector<1x128x4xf32> to vector<128x4xf32>
    %cst = arith.constant 0.000000e+00 : f32
    %2 = vector.broadcast %cst : f32 to vector<16x4xf32>
    %c0_2 = arith.constant 0 : index
    %c0_3 = arith.constant 0 : index
    %3 = vector.load %arg8[%c0_2, %c0_3] : memref<176x24xf32, #tpu.memory_space<vmem>>, vector<16x4xf32>
    tpu.vector_store %arg8[%c0_2, %c0_3], %2 {strides = array<i32>} : memref<176x24xf32, #tpu.memory_space<vmem>>, vector<16x4xf32>,
    %c16 = arith.constant 16 : index
    %c0_4 = arith.constant 0 : index
    %4 = vector.load %arg8[%c16, %c0_4] : memref<176x24xf32, #tpu.memory_space<vmem>>, vector<128x4xf32>
    tpu.vector_store %arg8[%c16, %c0_4], %1 {strides = array<i32>} : memref<176x24xf32, #tpu.memory_space<vmem>>, vector<128x4xf32>,
    %cst_5 = arith.constant 0.000000e+00 : f32
    %5 = vector.broadcast %cst_5 : f32 to vector<8x4xf32>
    %c0_6 = arith.constant 0 : index
    %c4 = arith.constant 4 : index
    %6 = vector.load %arg8[%c0_6, %c4] : memref<176x24xf32, #tpu.memory_space<vmem>>, vector<8x4xf32>
    tpu.vector_store %arg8[%c0_6, %c4], %5 {strides = array<i32>} : memref<176x24xf32, #tpu.memory_space<vmem>>, vector<8x4xf32>,
    %cst_7 = arith.constant 0.000000e+00 : f32
    %7 = vector.broadcast %cst_7 : f32 to vector<8x4xf32>
    %c136 = arith.constant 136 : index
    %c4_8 = arith.constant 4 : index
    %8 = vector.load %arg8[%c136, %c4_8] : memref<176x24xf32, #tpu.memory_space<vmem>>, vector<8x4xf32>
    tpu.vector_store %arg8[%c136, %c4_8], %7 {strides = array<i32>} : memref<176x24xf32, #tpu.memory_space<vmem>>, vector<8x4xf32>,
    %c8 = arith.constant 8 : index
    %c4_9 = arith.constant 4 : index
    %9 = vector.load %arg8[%c8, %c4_9] : memref<176x24xf32, #tpu.memory_space<vmem>>, vector<128x4xf32>
    tpu.vector_store %arg8[%c8, %c4_9], %1 {strides = array<i32>} : memref<176x24xf32, #tpu.memory_space<vmem>>, vector<128x4xf32>,
    %cst_10 = arith.constant 0.000000e+00 : f32
    %10 = vector.broadcast %cst_10 : f32 to vector<16x4xf32>
    %c128 = arith.constant 128 : index
    %c8_11 = arith.constant 8 : index
    %11 = vector.load %arg8[%c128, %c8_11] : memref<176x24xf32, #tpu.memory_space<vmem>>, vector<16x4xf32>
    tpu.vector_store %arg8[%c128, %c8_11], %10 {strides = array<i32>} : memref<176x24xf32, #tpu.memory_space<vmem>>, vector<16x4xf32>,
    %c0_12 = arith.constant 0 : index
    %c8_13 = arith.constant 8 : index
    %12 = vector.load %arg8[%c0_12, %c8_13] : memref<176x24xf32, #tpu.memory_space<vmem>>, vector<128x4xf32>
    tpu.vector_store %arg8[%c0_12, %c8_13], %1 {strides = array<i32>} : memref<176x24xf32, #tpu.memory_space<vmem>>, vector<128x4xf32>,
    %c0_14 = arith.constant 0 : index
    %c0_15 = arith.constant 0 : index
    %13 = vector.load %arg8[%c0_14, %c0_15] : memref<176x24xf32, #tpu.memory_space<vmem>>, vector<144x12xf32>
    %c0_16 = arith.constant 0 : index
    %c0_17 = arith.constant 0 : index
    %14 = vector.load %arg2[%c0_16, %c0_17] : memref<12x8xf32, #tpu.memory_space<vmem>>, vector<12x8xf32>
    %cst_18 = arith.constant dense<0.000000e+00> : vector<144x8xf32>
    %15 = tpu.matmul %13, %14, %cst_18 {dimension_numbers = #tpu.dot_dimension_numbers<[1], [0], [0], [1], [0, 0, 1, 1], [], []>} : vector<144x12xf32>, vector<12x8xf32>, vector<144x8xf32> -> vector<144x8xf32>
    %c0_19 = arith.constant 0 : index
    %c0_20 = arith.constant 0 : index
    %c0_21 = arith.constant 0 : index
    %16 = vector.load %arg4[%c0_19, %c0_20, %c0_21] : memref<2x3x8xf32, #tpu.memory_space<vmem>>, vector<1x3x8xf32>
    %17 = vector.shape_cast %16 : vector<1x3x8xf32> to vector<3x8xf32>
    %18 = vector.extract_strided_slice %17 {offsets = [0, 0], sizes = [1, 8], strides = [1, 1]} : vector<3x8xf32> to vector<1x8xf32>
    %19 = vector.broadcast %18 : vector<1x8xf32> to vector<144x8xf32>
    %20 = arith.addf %15, %19 : vector<144x8xf32>
    %cst_22 = arith.constant 0.000000e+00 : f32
    %21 = vector.broadcast %cst_22 : f32 to vector<144x8xf32>
    %22 = arith.maximumf %20, %21 : vector<144x8xf32>
    %23 = vector.extract_strided_slice %17 {offsets = [1, 0], sizes = [1, 8], strides = [1, 1]} : vector<3x8xf32> to vector<1x8xf32>
    %24 = vector.broadcast %23 : vector<1x8xf32> to vector<144x8xf32>
    %25 = arith.mulf %22, %24 : vector<144x8xf32>
    %26 = vector.extract_strided_slice %17 {offsets = [2, 0], sizes = [1, 8], strides = [1, 1]} : vector<3x8xf32> to vector<1x8xf32>
    %27 = vector.broadcast %26 : vector<1x8xf32> to vector<144x8xf32>
    %28 = arith.addf %25, %27 : vector<144x8xf32>
    %cst_23 = arith.constant 0.000000e+00 : f32
    %29 = vector.broadcast %cst_23 : f32 to vector<32x8xf32>
    %c0_24 = arith.constant 0 : index
    %c0_25 = arith.constant 0 : index
    %30 = vector.load %arg8[%c0_24, %c0_25] : memref<176x24xf32, #tpu.memory_space<vmem>>, vector<32x8xf32>
    tpu.vector_store %arg8[%c0_24, %c0_25], %29 {strides = array<i32>} : memref<176x24xf32, #tpu.memory_space<vmem>>, vector<32x8xf32>,
    %c32 = arith.constant 32 : index
    %c0_26 = arith.constant 0 : index
    %31 = vector.load %arg8[%c32, %c0_26] : memref<176x24xf32, #tpu.memory_space<vmem>>, vector<144x8xf32>
    tpu.vector_store %arg8[%c32, %c0_26], %28 {strides = array<i32>} : memref<176x24xf32, #tpu.memory_space<vmem>>, vector<144x8xf32>,
    %cst_27 = arith.constant 0.000000e+00 : f32
    %32 = vector.broadcast %cst_27 : f32 to vector<16x8xf32>
    %c0_28 = arith.constant 0 : index
    %c8_29 = arith.constant 8 : index
    %33 = vector.load %arg8[%c0_28, %c8_29] : memref<176x24xf32, #tpu.memory_space<vmem>>, vector<16x8xf32>
    tpu.vector_store %arg8[%c0_28, %c8_29], %32 {strides = array<i32>} : memref<176x24xf32, #tpu.memory_space<vmem>>, vector<16x8xf32>,
    %cst_30 = arith.constant 0.000000e+00 : f32
    %34 = vector.broadcast %cst_30 : f32 to vector<16x8xf32>
    %c160 = arith.constant 160 : index
    %c8_31 = arith.constant 8 : index
    %35 = vector.load %arg8[%c160, %c8_31] : memref<176x24xf32, #tpu.memory_space<vmem>>, vector<16x8xf32>
    tpu.vector_store %arg8[%c160, %c8_31], %34 {strides = array<i32>} : memref<176x24xf32, #tpu.memory_space<vmem>>, vector<16x8xf32>,
    %c16_32 = arith.constant 16 : index
    %c8_33 = arith.constant 8 : index
    %36 = vector.load %arg8[%c16_32, %c8_33] : memref<176x24xf32, #tpu.memory_space<vmem>>, vector<144x8xf32>
    tpu.vector_store %arg8[%c16_32, %c8_33], %28 {strides = array<i32>} : memref<176x24xf32, #tpu.memory_space<vmem>>, vector<144x8xf32>,
    %cst_34 = arith.constant 0.000000e+00 : f32
    %37 = vector.broadcast %cst_34 : f32 to vector<32x8xf32>
    %c144 = arith.constant 144 : index
    %c16_35 = arith.constant 16 : index
    %38 = vector.load %arg8[%c144, %c16_35] : memref<176x24xf32, #tpu.memory_space<vmem>>, vector<32x8xf32>
    tpu.vector_store %arg8[%c144, %c16_35], %37 {strides = array<i32>} : memref<176x24xf32, #tpu.memory_space<vmem>>, vector<32x8xf32>,
    %c0_36 = arith.constant 0 : index
    %c16_37 = arith.constant 16 : index
    %39 = vector.load %arg8[%c0_36, %c16_37] : memref<176x24xf32, #tpu.memory_space<vmem>>, vector<144x8xf32>
    tpu.vector_store %arg8[%c0_36, %c16_37], %28 {strides = array<i32>} : memref<176x24xf32, #tpu.memory_space<vmem>>, vector<144x8xf32>,
    %c0_38 = arith.constant 0 : index
    %c0_39 = arith.constant 0 : index
    %40 = vector.load %arg8[%c0_38, %c0_39] : memref<176x24xf32, #tpu.memory_space<vmem>>, vector<176x24xf32>
    %c0_40 = arith.constant 0 : index
    %c0_41 = arith.constant 0 : index
    %41 = vector.load %arg3[%c0_40, %c0_41] : memref<24x8xf32, #tpu.memory_space<vmem>>, vector<24x8xf32>
    %cst_42 = arith.constant dense<0.000000e+00> : vector<176x8xf32>
    %42 = tpu.matmul %40, %41, %cst_42 {dimension_numbers = #tpu.dot_dimension_numbers<[1], [0], [0], [1], [0, 0, 1, 1], [], []>} : vector<176x24xf32>, vector<24x8xf32>, vector<176x8xf32> -> vector<176x8xf32>
    %c1 = arith.constant 1 : index
    %c0_43 = arith.constant 0 : index
    %c0_44 = arith.constant 0 : index
    %43 = vector.load %arg4[%c1, %c0_43, %c0_44] : memref<2x3x8xf32, #tpu.memory_space<vmem>>, vector<1x3x8xf32>
    %44 = vector.shape_cast %43 : vector<1x3x8xf32> to vector<3x8xf32>
    %45 = vector.extract_strided_slice %44 {offsets = [0, 0], sizes = [1, 8], strides = [1, 1]} : vector<3x8xf32> to vector<1x8xf32>
    %46 = vector.broadcast %45 : vector<1x8xf32> to vector<176x8xf32>
    %47 = arith.addf %42, %46 : vector<176x8xf32>
    %cst_45 = arith.constant 0.000000e+00 : f32
    %48 = vector.broadcast %cst_45 : f32 to vector<176x8xf32>
    %49 = arith.maximumf %47, %48 : vector<176x8xf32>
    %50 = vector.extract_strided_slice %44 {offsets = [1, 0], sizes = [1, 8], strides = [1, 1]} : vector<3x8xf32> to vector<1x8xf32>
    %51 = vector.broadcast %50 : vector<1x8xf32> to vector<176x8xf32>
    %52 = arith.mulf %49, %51 : vector<176x8xf32>
    %53 = vector.extract_strided_slice %44 {offsets = [2, 0], sizes = [1, 8], strides = [1, 1]} : vector<3x8xf32> to vector<1x8xf32>
    %54 = vector.broadcast %53 : vector<1x8xf32> to vector<176x8xf32>
    %55 = arith.addf %52, %54 : vector<176x8xf32>
    %56 = vector.extract_strided_slice %55 {offsets = [0, 0], sizes = [8, 8], strides = [1, 1]} : vector<176x8xf32> to vector<8x8xf32>
    %c0_46 = arith.constant 0 : index
    %c0_47 = arith.constant 0 : index
    %57 = vector.load %arg9[%c0_46, %c0_47] : memref<8x176xf32, #tpu.memory_space<vmem>>, vector<8x8xf32>
    tpu.vector_store %arg9[%c0_46, %c0_47], %56 {strides = array<i32>} : memref<8x176xf32, #tpu.memory_space<vmem>>, vector<8x8xf32>,
    %58 = vector.extract_strided_slice %55 {offsets = [8, 0], sizes = [8, 8], strides = [1, 1]} : vector<176x8xf32> to vector<8x8xf32>
    %c0_48 = arith.constant 0 : index
    %c8_49 = arith.constant 8 : index
    %59 = vector.load %arg9[%c0_48, %c8_49] : memref<8x176xf32, #tpu.memory_space<vmem>>, vector<8x8xf32>
    tpu.vector_store %arg9[%c0_48, %c8_49], %58 {strides = array<i32>} : memref<8x176xf32, #tpu.memory_space<vmem>>, vector<8x8xf32>,
    %60 = vector.extract_strided_slice %55 {offsets = [16, 0], sizes = [8, 8], strides = [1, 1]} : vector<176x8xf32> to vector<8x8xf32>
    %c0_50 = arith.constant 0 : index
    %c16_51 = arith.constant 16 : index
    %61 = vector.load %arg9[%c0_50, %c16_51] : memref<8x176xf32, #tpu.memory_space<vmem>>, vector<8x8xf32>
    tpu.vector_store %arg9[%c0_50, %c16_51], %60 {strides = array<i32>} : memref<8x176xf32, #tpu.memory_space<vmem>>, vector<8x8xf32>,
    %62 = vector.extract_strided_slice %55 {offsets = [24, 0], sizes = [8, 8], strides = [1, 1]} : vector<176x8xf32> to vector<8x8xf32>
    %c0_52 = arith.constant 0 : index
    %c24 = arith.constant 24 : index
    %63 = vector.load %arg9[%c0_52, %c24] : memref<8x176xf32, #tpu.memory_space<vmem>>, vector<8x8xf32>
    tpu.vector_store %arg9[%c0_52, %c24], %62 {strides = array<i32>} : memref<8x176xf32, #tpu.memory_space<vmem>>, vector<8x8xf32>,
    %64 = vector.extract_strided_slice %55 {offsets = [32, 0], sizes = [8, 8], strides = [1, 1]} : vector<176x8xf32> to vector<8x8xf32>
    %c0_53 = arith.constant 0 : index
    %c32_54 = arith.constant 32 : index
    %65 = vector.load %arg9[%c0_53, %c32_54] : memref<8x176xf32, #tpu.memory_space<vmem>>, vector<8x8xf32>
    tpu.vector_store %arg9[%c0_53, %c32_54], %64 {strides = array<i32>} : memref<8x176xf32, #tpu.memory_space<vmem>>, vector<8x8xf32>,
    %66 = vector.extract_strided_slice %55 {offsets = [40, 0], sizes = [8, 8], strides = [1, 1]} : vector<176x8xf32> to vector<8x8xf32>
    %c0_55 = arith.constant 0 : index
    %c40 = arith.constant 40 : index
    %67 = vector.load %arg9[%c0_55, %c40] : memref<8x176xf32, #tpu.memory_space<vmem>>, vector<8x8xf32>
    tpu.vector_store %arg9[%c0_55, %c40], %66 {strides = array<i32>} : memref<8x176xf32, #tpu.memory_space<vmem>>, vector<8x8xf32>,
    %68 = vector.extract_strided_slice %55 {offsets = [48, 0], sizes = [8, 8], strides = [1, 1]} : vector<176x8xf32> to vector<8x8xf32>
    %c0_56 = arith.constant 0 : index
    %c48 = arith.constant 48 : index
    %69 = vector.load %arg9[%c0_56, %c48] : memref<8x176xf32, #tpu.memory_space<vmem>>, vector<8x8xf32>
    tpu.vector_store %arg9[%c0_56, %c48], %68 {strides = array<i32>} : memref<8x176xf32, #tpu.memory_space<vmem>>, vector<8x8xf32>,
    %70 = vector.extract_strided_slice %55 {offsets = [56, 0], sizes = [8, 8], strides = [1, 1]} : vector<176x8xf32> to vector<8x8xf32>
    %c0_57 = arith.constant 0 : index
    %c56 = arith.constant 56 : index
    %71 = vector.load %arg9[%c0_57, %c56] : memref<8x176xf32, #tpu.memory_space<vmem>>, vector<8x8xf32>
    tpu.vector_store %arg9[%c0_57, %c56], %70 {strides = array<i32>} : memref<8x176xf32, #tpu.memory_space<vmem>>, vector<8x8xf32>,
    %72 = vector.extract_strided_slice %55 {offsets = [64, 0], sizes = [8, 8], strides = [1, 1]} : vector<176x8xf32> to vector<8x8xf32>
    %c0_58 = arith.constant 0 : index
    %c64 = arith.constant 64 : index
    %73 = vector.load %arg9[%c0_58, %c64] : memref<8x176xf32, #tpu.memory_space<vmem>>, vector<8x8xf32>
    tpu.vector_store %arg9[%c0_58, %c64], %72 {strides = array<i32>} : memref<8x176xf32, #tpu.memory_space<vmem>>, vector<8x8xf32>,
    %74 = vector.extract_strided_slice %55 {offsets = [72, 0], sizes = [8, 8], strides = [1, 1]} : vector<176x8xf32> to vector<8x8xf32>
    %c0_59 = arith.constant 0 : index
    %c72 = arith.constant 72 : index
    %75 = vector.load %arg9[%c0_59, %c72] : memref<8x176xf32, #tpu.memory_space<vmem>>, vector<8x8xf32>
    tpu.vector_store %arg9[%c0_59, %c72], %74 {strides = array<i32>} : memref<8x176xf32, #tpu.memory_space<vmem>>, vector<8x8xf32>,
    %76 = vector.extract_strided_slice %55 {offsets = [80, 0], sizes = [8, 8], strides = [1, 1]} : vector<176x8xf32> to vector<8x8xf32>
    %c0_60 = arith.constant 0 : index
    %c80 = arith.constant 80 : index
    %77 = vector.load %arg9[%c0_60, %c80] : memref<8x176xf32, #tpu.memory_space<vmem>>, vector<8x8xf32>
    tpu.vector_store %arg9[%c0_60, %c80], %76 {strides = array<i32>} : memref<8x176xf32, #tpu.memory_space<vmem>>, vector<8x8xf32>,
    %78 = vector.extract_strided_slice %55 {offsets = [88, 0], sizes = [8, 8], strides = [1, 1]} : vector<176x8xf32> to vector<8x8xf32>
    %c0_61 = arith.constant 0 : index
    %c88 = arith.constant 88 : index
    %79 = vector.load %arg9[%c0_61, %c88] : memref<8x176xf32, #tpu.memory_space<vmem>>, vector<8x8xf32>
    tpu.vector_store %arg9[%c0_61, %c88], %78 {strides = array<i32>} : memref<8x176xf32, #tpu.memory_space<vmem>>, vector<8x8xf32>,
    %80 = vector.extract_strided_slice %55 {offsets = [96, 0], sizes = [8, 8], strides = [1, 1]} : vector<176x8xf32> to vector<8x8xf32>
    %c0_62 = arith.constant 0 : index
    %c96 = arith.constant 96 : index
    %81 = vector.load %arg9[%c0_62, %c96] : memref<8x176xf32, #tpu.memory_space<vmem>>, vector<8x8xf32>
    tpu.vector_store %arg9[%c0_62, %c96], %80 {strides = array<i32>} : memref<8x176xf32, #tpu.memory_space<vmem>>, vector<8x8xf32>,
    %82 = vector.extract_strided_slice %55 {offsets = [104, 0], sizes = [8, 8], strides = [1, 1]} : vector<176x8xf32> to vector<8x8xf32>
    %c0_63 = arith.constant 0 : index
    %c104 = arith.constant 104 : index
    %83 = vector.load %arg9[%c0_63, %c104] : memref<8x176xf32, #tpu.memory_space<vmem>>, vector<8x8xf32>
    tpu.vector_store %arg9[%c0_63, %c104], %82 {strides = array<i32>} : memref<8x176xf32, #tpu.memory_space<vmem>>, vector<8x8xf32>,
    %84 = vector.extract_strided_slice %55 {offsets = [112, 0], sizes = [8, 8], strides = [1, 1]} : vector<176x8xf32> to vector<8x8xf32>
    %c0_64 = arith.constant 0 : index
    %c112 = arith.constant 112 : index
    %85 = vector.load %arg9[%c0_64, %c112] : memref<8x176xf32, #tpu.memory_space<vmem>>, vector<8x8xf32>
    tpu.vector_store %arg9[%c0_64, %c112], %84 {strides = array<i32>} : memref<8x176xf32, #tpu.memory_space<vmem>>, vector<8x8xf32>,
    %86 = vector.extract_strided_slice %55 {offsets = [120, 0], sizes = [8, 8], strides = [1, 1]} : vector<176x8xf32> to vector<8x8xf32>
    %c0_65 = arith.constant 0 : index
    %c120 = arith.constant 120 : index
    %87 = vector.load %arg9[%c0_65, %c120] : memref<8x176xf32, #tpu.memory_space<vmem>>, vector<8x8xf32>
    tpu.vector_store %arg9[%c0_65, %c120], %86 {strides = array<i32>} : memref<8x176xf32, #tpu.memory_space<vmem>>, vector<8x8xf32>,
    %88 = vector.extract_strided_slice %55 {offsets = [128, 0], sizes = [8, 8], strides = [1, 1]} : vector<176x8xf32> to vector<8x8xf32>
    %c0_66 = arith.constant 0 : index
    %c128_67 = arith.constant 128 : index
    %89 = vector.load %arg9[%c0_66, %c128_67] : memref<8x176xf32, #tpu.memory_space<vmem>>, vector<8x8xf32>
    tpu.vector_store %arg9[%c0_66, %c128_67], %88 {strides = array<i32>} : memref<8x176xf32, #tpu.memory_space<vmem>>, vector<8x8xf32>,
    %90 = vector.extract_strided_slice %55 {offsets = [136, 0], sizes = [8, 8], strides = [1, 1]} : vector<176x8xf32> to vector<8x8xf32>
    %c0_68 = arith.constant 0 : index
    %c136_69 = arith.constant 136 : index
    %91 = vector.load %arg9[%c0_68, %c136_69] : memref<8x176xf32, #tpu.memory_space<vmem>>, vector<8x8xf32>
    tpu.vector_store %arg9[%c0_68, %c136_69], %90 {strides = array<i32>} : memref<8x176xf32, #tpu.memory_space<vmem>>, vector<8x8xf32>,
    %92 = vector.extract_strided_slice %55 {offsets = [144, 0], sizes = [8, 8], strides = [1, 1]} : vector<176x8xf32> to vector<8x8xf32>
    %c0_70 = arith.constant 0 : index
    %c144_71 = arith.constant 144 : index
    %93 = vector.load %arg9[%c0_70, %c144_71] : memref<8x176xf32, #tpu.memory_space<vmem>>, vector<8x8xf32>
    tpu.vector_store %arg9[%c0_70, %c144_71], %92 {strides = array<i32>} : memref<8x176xf32, #tpu.memory_space<vmem>>, vector<8x8xf32>,
    %94 = vector.extract_strided_slice %55 {offsets = [152, 0], sizes = [8, 8], strides = [1, 1]} : vector<176x8xf32> to vector<8x8xf32>
    %c0_72 = arith.constant 0 : index
    %c152 = arith.constant 152 : index
    %95 = vector.load %arg9[%c0_72, %c152] : memref<8x176xf32, #tpu.memory_space<vmem>>, vector<8x8xf32>
    tpu.vector_store %arg9[%c0_72, %c152], %94 {strides = array<i32>} : memref<8x176xf32, #tpu.memory_space<vmem>>, vector<8x8xf32>,
    %96 = vector.extract_strided_slice %55 {offsets = [160, 0], sizes = [8, 8], strides = [1, 1]} : vector<176x8xf32> to vector<8x8xf32>
    %c0_73 = arith.constant 0 : index
    %c160_74 = arith.constant 160 : index
    %97 = vector.load %arg9[%c0_73, %c160_74] : memref<8x176xf32, #tpu.memory_space<vmem>>, vector<8x8xf32>
    tpu.vector_store %arg9[%c0_73, %c160_74], %96 {strides = array<i32>} : memref<8x176xf32, #tpu.memory_space<vmem>>, vector<8x8xf32>,
    %98 = vector.extract_strided_slice %55 {offsets = [168, 0], sizes = [8, 8], strides = [1, 1]} : vector<176x8xf32> to vector<8x8xf32>
    %c0_75 = arith.constant 0 : index
    %c168 = arith.constant 168 : index
    %99 = vector.load %arg9[%c0_75, %c168] : memref<8x176xf32, #tpu.memory_space<vmem>>, vector<8x8xf32>
    tpu.vector_store %arg9[%c0_75, %c168], %98 {strides = array<i32>} : memref<8x176xf32, #tpu.memory_space<vmem>>, vector<8x8xf32>,
    %c0_76 = arith.constant 0 : index
    %c0_77 = arith.constant 0 : index
    %100 = vector.load %arg9[%c0_76, %c0_77] : memref<8x176xf32, #tpu.memory_space<vmem>>, vector<8x176xf32>
    %c0_78 = arith.constant 0 : index
    %c0_79 = arith.constant 0 : index
    %101 = vector.load %arg5[%c0_78, %c0_79] : memref<176x8xf32, #tpu.memory_space<vmem>>, vector<176x8xf32>
    %cst_80 = arith.constant dense<0.000000e+00> : vector<8x8xf32>
    %102 = tpu.matmul %100, %101, %cst_80 {dimension_numbers = #tpu.dot_dimension_numbers<[1], [0], [0], [1], [0, 0, 1, 1], [], []>} : vector<8x176xf32>, vector<176x8xf32>, vector<8x8xf32> -> vector<8x8xf32>
    %c0_81 = arith.constant 0 : index
    %c0_82 = arith.constant 0 : index
    %103 = vector.load %arg6[%c0_81, %c0_82] : memref<1x8xf32, #tpu.memory_space<vmem>>, vector<1x8xf32>
    %104 = vector.broadcast %103 : vector<1x8xf32> to vector<8x8xf32>
    %105 = arith.addf %102, %104 : vector<8x8xf32>
    %c0_83 = arith.constant 0 : index
    %c0_84 = arith.constant 0 : index
    %106 = vector.load %arg7[%c0_83, %c0_84] : memref<8x8xf32, #tpu.memory_space<vmem>>, vector<8x8xf32>
    tpu.vector_store %arg7[%c0_83, %c0_84], %105 {strides = array<i32>} : memref<8x8xf32, #tpu.memory_space<vmem>>, vector<8x8xf32>,
    return
  }
  func.func @transform_0(%arg0: i32) -> (i32, i32, i32) {
    %c0_i32 = arith.constant 0 : i32
    %c0_i32_0 = arith.constant 0 : i32
    %c0_i32_1 = arith.constant 0 : i32
    return %arg0, %c0_i32, %c0_i32_0 : i32, i32, i32
  }
  func.func @transform_1(%arg0: i32) -> (i32, i32) {
    %c0_i32 = arith.constant 0 : i32
    %c0_i32_0 = arith.constant 0 : i32
    %c0_i32_1 = arith.constant 0 : i32
    return %c0_i32, %c0_i32_0 : i32, i32
  }
  func.func @transform_2(%arg0: i32) -> (i32, i32) {
    %c0_i32 = arith.constant 0 : i32
    %c0_i32_0 = arith.constant 0 : i32
    %c0_i32_1 = arith.constant 0 : i32
    return %c0_i32, %c0_i32_0 : i32, i32
  }
  func.func @transform_3(%arg0: i32) -> (i32, i32, i32) {
    %c0_i32 = arith.constant 0 : i32
    %c0_i32_0 = arith.constant 0 : i32
    %c0_i32_1 = arith.constant 0 : i32
    %c0_i32_2 = arith.constant 0 : i32
    return %c0_i32, %c0_i32_0, %c0_i32_1 : i32, i32, i32
  }
  func.func @transform_4(%arg0: i32) -> (i32, i32) {
    %c0_i32 = arith.constant 0 : i32
    %c0_i32_0 = arith.constant 0 : i32
    %c0_i32_1 = arith.constant 0 : i32
    return %c0_i32, %c0_i32_0 : i32, i32
  }
  func.func @transform_5(%arg0: i32) -> (i32, i32) {
    %c0_i32 = arith.constant 0 : i32
    %c0_i32_0 = arith.constant 0 : i32
    %c0_i32_1 = arith.constant 0 : i32
    return %c0_i32, %c0_i32_0 : i32, i32
  }
  func.func @transform_6(%arg0: i32) -> (i32, i32) {
    %c0_i32 = arith.constant 0 : i32
    %c0_i32_0 = arith.constant 0 : i32
    return %arg0, %c0_i32 : i32, i32
  }
}

</mosaic_0001>

<llo_original>
// kernel: tpu_custom_call.1
$region0: #{tpu_custom_call.1}
  #allocation0 [shape = 'u32[]', space=smem, size = 0x4, offset = 0x4, fixed_abs, tag = 'smem constant byte address 0x4 - core index']
  #allocation1 [shape = 'u32[72,128]{1,0:T(1,128)}', space=vmem, size = 0x9000, scoped, tag = 'internal scratch']
  #allocation2 [shape = 'f32[176,24]{1,0:T(8,128)}', space=vmem, size = 0x16000, scoped, tag = 'scratch operand']
  #allocation3 [shape = 'f32[8,176]{1,0:T(8,128)}', space=vmem, size = 0x2000, scoped, tag = 'scratch operand']
  %s0 = inlined_call_operand.vmem [shape: f32[1,128,4], index: 0, kind: input, shape index: {}]
  %s1 = inlined_call_operand.vmem [shape: f32[12,8], index: 1, kind: input, shape index: {}]
  %s2 = inlined_call_operand.vmem [shape: f32[24,8], index: 2, kind: input, shape index: {}]
  %s3 = inlined_call_operand.vmem [shape: f32[2,3,8], index: 3, kind: input, shape index: {}]
  %s4 = inlined_call_operand.vmem [shape: f32[176,8], index: 4, kind: input, shape index: {}]
  %s5 = inlined_call_operand.vmem [shape: f32[1,8], index: 5, kind: input, shape index: {}]
  %s6 = inlined_call_operand.hbm [shape: f32[8,8], index: 6, kind: output, shape index: {}]
  %s7 = sld [smem:[#allocation0]]
  $region34: #{tpu_custom_call.1} parent=0
    _
  %s9 = ssub.s32 1, %s7
  %s10 = scalar_select 0, %s9, %s7
  $region1: #{tpu_custom_call.1} parent=0
    #allocation4 [shape = 'u8[4096]{0}', space=vmem, size = 0x1000, scoped, tag = 'output window, operand 0, single buffered']
    #allocation5 [shape = 's32[1]{0}', space=sflag, size = 0x4, scoped, tag = 'scoped memory for tpu_custom_call.1']
    %11 = vsyncpa [#allocation5], 0
    // Predicated region
    $region2: #{tpu_custom_call.1} parent=1 // pred_check
      _
    $region3: #{tpu_custom_call.1} parent=1 // pred_check_branch
      %13 = sbr.rel (0) target = $region5
    $region4: #{tpu_custom_call.1} parent=1 // pred_region
      _
    $region5: #{tpu_custom_call.1} parent=1 // pred_fallthru
      _
    // Predicated region
    $region6: #{tpu_custom_call.1} parent=1 // pred_check
      _
    $region7: #{tpu_custom_call.1} parent=1 // pred_check_branch
      %15 = sbr.rel (0) target = $region9
    $region8: #{tpu_custom_call.1} parent=1 // pred_region
      _
    $region9: #{tpu_custom_call.1} parent=1 // pred_fallthru
      _
    // Predicated region
    $region10: #{tpu_custom_call.1} parent=1 // pred_check
      _
    $region11: #{tpu_custom_call.1} parent=1 // pred_check_branch
      %17 = sbr.rel (0) target = $region13
    $region12: #{tpu_custom_call.1} parent=1 // pred_region
      _
    $region13: #{tpu_custom_call.1} parent=1 // pred_fallthru
      _
    // Predicated region
    $region14: #{tpu_custom_call.1} parent=1 // pred_check
      _
    $region15: #{tpu_custom_call.1} parent=1 // pred_check_branch
      %19 = sbr.rel (0) target = $region17
    $region16: #{tpu_custom_call.1} parent=1 // pred_region
      _
    $region17: #{tpu_custom_call.1} parent=1 // pred_fallthru
      _
    // Predicated region
    $region18: #{tpu_custom_call.1} parent=1 // pred_check
      _
    $region19: #{tpu_custom_call.1} parent=1 // pred_check_branch
      %21 = sbr.rel (0) target = $region21
    $region20: #{tpu_custom_call.1} parent=1 // pred_region
      _
    $region21: #{tpu_custom_call.1} parent=1 // pred_fallthru
      _
    // Predicated region
    $region22: #{tpu_custom_call.1} parent=1 // pred_check
      _
    $region23: #{tpu_custom_call.1} parent=1 // pred_check_branch
      %23 = sbr.rel (0) target = $region25
    $region24: #{tpu_custom_call.1} parent=1 // pred_region
      _
    $region25: #{tpu_custom_call.1} parent=1 // pred_fallthru
      _
    %v24 = vld [vmem:[%s0] sm:$0xff]
    %v25 = vld [vmem:[%s0 + $0x8] sm:$0xff]
    %v26 = vld [vmem:[%s0 + $0x10] sm:$0xff]
    %v27 = vld [vmem:[%s0 + $0x18] sm:$0xff]
    %v28 = vld [vmem:[%s0 + $0x20] sm:$0xff]
    %v29 = vld [vmem:[%s0 + $0x28] sm:$0xff]
    %v30 = vld [vmem:[%s0 + $0x30] sm:$0xff]
    %v31 = vld [vmem:[%s0 + $0x38] sm:$0xff]
    %v32 = vld [vmem:[%s0 + $0x40] sm:$0xff]
    %v33 = vld [vmem:[%s0 + $0x48] sm:$0xff]
    %v34 = vld [vmem:[%s0 + $0x50] sm:$0xff]
    %v35 = vld [vmem:[%s0 + $0x58] sm:$0xff]
    %v36 = vld [vmem:[%s0 + $0x60] sm:$0xff]
    %v37 = vld [vmem:[%s0 + $0x68] sm:$0xff]
    %v38 = vld [vmem:[%s0 + $0x70] sm:$0xff]
    %v39 = vld [vmem:[%s0 + $0x78] sm:$0xff]
    %vm40 = vcmask 31744
    %41 = vst.msk [vmem:[#allocation2] sm:$0xff] %vm40, 0.0
    %42 = vst.msk [vmem:[#allocation2 + $0x8] sm:$0xff] %vm40, 0.0
    %43 = vst.msk [vmem:[#allocation2 + $0x10] sm:$0xff] %vm40, %v24
    %44 = vst.msk [vmem:[#allocation2 + $0x18] sm:$0xff] %vm40, %v25
    %45 = vst.msk [vmem:[#allocation2 + $0x20] sm:$0xff] %vm40, %v26
    %46 = vst.msk [vmem:[#allocation2 + $0x28] sm:$0xff] %vm40, %v27
    %47 = vst.msk [vmem:[#allocation2 + $0x30] sm:$0xff] %vm40, %v28
    %48 = vst.msk [vmem:[#allocation2 + $0x38] sm:$0xff] %vm40, %v29
    %49 = vst.msk [vmem:[#allocation2 + $0x40] sm:$0xff] %vm40, %v30
    %50 = vst.msk [vmem:[#allocation2 + $0x48] sm:$0xff] %vm40, %v31
    %51 = vst.msk [vmem:[#allocation2 + $0x50] sm:$0xff] %vm40, %v32
    %52 = vst.msk [vmem:[#allocation2 + $0x58] sm:$0xff] %vm40, %v33
    %53 = vst.msk [vmem:[#allocation2 + $0x60] sm:$0xff] %vm40, %v34
    %54 = vst.msk [vmem:[#allocation2 + $0x68] sm:$0xff] %vm40, %v35
    %55 = vst.msk [vmem:[#allocation2 + $0x70] sm:$0xff] %vm40, %v36
    %56 = vst.msk [vmem:[#allocation2 + $0x78] sm:$0xff] %vm40, %v37
    %57 = vst.msk [vmem:[#allocation2 + $0x80] sm:$0xff] %vm40, %v38
    %58 = vst.msk [vmem:[#allocation2 + $0x88] sm:$0xff] %vm40, %v39
    %vm59 = vcmask 64544
    %60 = vst.msk [vmem:[#allocation2] sm:$0xff] %vm59, 0.0
    %61 = vst.msk [vmem:[#allocation2 + $0x88] sm:$0xff] %vm59, 0.0
    %78 = vrot.lane.b32.xlu0 %v24, 4
    %v79 = vpop.permute.xlu0 %78
    %80 = vrot.lane.b32.xlu0 %v25, 4
    %v81 = vpop.permute.xlu0 %80
    %82 = vrot.lane.b32.xlu0 %v26, 4
    %v83 = vpop.permute.xlu0 %82
    %84 = vrot.lane.b32.xlu0 %v27, 4
    %v85 = vpop.permute.xlu0 %84
    %86 = vrot.lane.b32.xlu0 %v28, 4
    %v87 = vpop.permute.xlu0 %86
    %88 = vrot.lane.b32.xlu0 %v29, 4
    %v89 = vpop.permute.xlu0 %88
    %90 = vrot.lane.b32.xlu0 %v30, 4
    %v91 = vpop.permute.xlu0 %90
    %92 = vrot.lane.b32.xlu0 %v31, 4
    %v93 = vpop.permute.xlu0 %92
    %94 = vrot.lane.b32.xlu0 %v32, 4
    %v95 = vpop.permute.xlu0 %94
    %96 = vrot.lane.b32.xlu0 %v33, 4
    %v97 = vpop.permute.xlu0 %96
    %98 = vrot.lane.b32.xlu0 %v34, 4
    %v99 = vpop.permute.xlu0 %98
    %100 = vrot.lane.b32.xlu0 %v35, 4
    %v101 = vpop.permute.xlu0 %100
    %102 = vrot.lane.b32.xlu0 %v36, 4
    %v103 = vpop.permute.xlu0 %102
    %104 = vrot.lane.b32.xlu0 %v37, 4
    %v105 = vpop.permute.xlu0 %104
    %106 = vrot.lane.b32.xlu0 %v38, 4
    %v107 = vpop.permute.xlu0 %106
    %108 = vrot.lane.b32.xlu0 %v39, 4
    %v109 = vpop.permute.xlu0 %108
    %126 = vst.msk [vmem:[#allocation2 + $0x8] sm:$0xff] %vm59, %v79
    %127 = vst.msk [vmem:[#allocation2 + $0x10] sm:$0xff] %vm59, %v81
    %128 = vst.msk [vmem:[#allocation2 + $0x18] sm:$0xff] %vm59, %v83
    %129 = vst.msk [vmem:[#allocation2 + $0x20] sm:$0xff] %vm59, %v85
    %130 = vst.msk [vmem:[#allocation2 + $0x28] sm:$0xff] %vm59, %v87
    %131 = vst.msk [vmem:[#allocation2 + $0x30] sm:$0xff] %vm59, %v89
    %132 = vst.msk [vmem:[#allocation2 + $0x38] sm:$0xff] %vm59, %v91
    %133 = vst.msk [vmem:[#allocation2 + $0x40] sm:$0xff] %vm59, %v93
    %134 = vst.msk [vmem:[#allocation2 + $0x48] sm:$0xff] %vm59, %v95
    %135 = vst.msk [vmem:[#allocation2 + $0x50] sm:$0xff] %vm59, %v97
    %136 = vst.msk [vmem:[#allocation2 + $0x58] sm:$0xff] %vm59, %v99
    %137 = vst.msk [vmem:[#allocation2 + $0x60] sm:$0xff] %vm59, %v101
    %138 = vst.msk [vmem:[#allocation2 + $0x68] sm:$0xff] %vm59, %v103
    %139 = vst.msk [vmem:[#allocation2 + $0x70] sm:$0xff] %vm59, %v105
    %140 = vst.msk [vmem:[#allocation2 + $0x78] sm:$0xff] %vm59, %v107
    %141 = vst.msk [vmem:[#allocation2 + $0x80] sm:$0xff] %vm59, %v109
    %vm142 = vcmask 97344
    %143 = vst.msk [vmem:[#allocation2 + $0x80] sm:$0xff] %vm142, 0.0
    %144 = vst.msk [vmem:[#allocation2 + $0x88] sm:$0xff] %vm142, 0.0
    %145 = vrot.lane.b32.xlu0 %v24, 8
    %v146 = vpop.permute.xlu0 %145
    %147 = vrot.lane.b32.xlu0 %v25, 8
    %v148 = vpop.permute.xlu0 %147
    %149 = vrot.lane.b32.xlu0 %v26, 8
    %v150 = vpop.permute.xlu0 %149
    %151 = vrot.lane.b32.xlu0 %v27, 8
    %v152 = vpop.permute.xlu0 %151
    %153 = vrot.lane.b32.xlu0 %v28, 8
    %v154 = vpop.permute.xlu0 %153
    %155 = vrot.lane.b32.xlu0 %v29, 8
    %v156 = vpop.permute.xlu0 %155
    %157 = vrot.lane.b32.xlu0 %v30, 8
    %v158 = vpop.permute.xlu0 %157
    %159 = vrot.lane.b32.xlu0 %v31, 8
    %v160 = vpop.permute.xlu0 %159
    %161 = vrot.lane.b32.xlu0 %v32, 8
    %v162 = vpop.permute.xlu0 %161
    %163 = vrot.lane.b32.xlu0 %v33, 8
    %v164 = vpop.permute.xlu0 %163
    %165 = vrot.lane.b32.xlu0 %v34, 8
    %v166 = vpop.permute.xlu0 %165
    %167 = vrot.lane.b32.xlu0 %v35, 8
    %v168 = vpop.permute.xlu0 %167
    %169 = vrot.lane.b32.xlu0 %v36, 8
    %v170 = vpop.permute.xlu0 %169
    %171 = vrot.lane.b32.xlu0 %v37, 8
    %v172 = vpop.permute.xlu0 %171
    %173 = vrot.lane.b32.xlu0 %v38, 8
    %v174 = vpop.permute.xlu0 %173
    %175 = vrot.lane.b32.xlu0 %v39, 8
    %v176 = vpop.permute.xlu0 %175
    %193 = vst.msk [vmem:[#allocation2] sm:$0xff] %vm142, %v146
    %194 = vst.msk [vmem:[#allocation2 + $0x8] sm:$0xff] %vm142, %v148
    %195 = vst.msk [vmem:[#allocation2 + $0x10] sm:$0xff] %vm142, %v150
    %196 = vst.msk [vmem:[#allocation2 + $0x18] sm:$0xff] %vm142, %v152
    %197 = vst.msk [vmem:[#allocation2 + $0x20] sm:$0xff] %vm142, %v154
    %198 = vst.msk [vmem:[#allocation2 + $0x28] sm:$0xff] %vm142, %v156
    %199 = vst.msk [vmem:[#allocation2 + $0x30] sm:$0xff] %vm142, %v158
    %200 = vst.msk [vmem:[#allocation2 + $0x38] sm:$0xff] %vm142, %v160
    %201 = vst.msk [vmem:[#allocation2 + $0x40] sm:$0xff] %vm142, %v162
    %202 = vst.msk [vmem:[#allocation2 + $0x48] sm:$0xff] %vm142, %v164
    %203 = vst.msk [vmem:[#allocation2 + $0x50] sm:$0xff] %vm142, %v166
    %204 = vst.msk [vmem:[#allocation2 + $0x58] sm:$0xff] %vm142, %v168
    %205 = vst.msk [vmem:[#allocation2 + $0x60] sm:$0xff] %vm142, %v170
    %206 = vst.msk [vmem:[#allocation2 + $0x68] sm:$0xff] %vm142, %v172
    %207 = vst.msk [vmem:[#allocation2 + $0x70] sm:$0xff] %vm142, %v174
    %208 = vst.msk [vmem:[#allocation2 + $0x78] sm:$0xff] %vm142, %v176
    %v209 = vld [vmem:[#allocation2] sm:$0xff]
    %v210 = vld [vmem:[#allocation2 + $0x8] sm:$0xff]
    %v211 = vld [vmem:[#allocation2 + $0x10] sm:$0xff]
    %v212 = vld [vmem:[#allocation2 + $0x18] sm:$0xff]
    %v213 = vld [vmem:[#allocation2 + $0x20] sm:$0xff]
    %v214 = vld [vmem:[#allocation2 + $0x28] sm:$0xff]
    %v215 = vld [vmem:[#allocation2 + $0x30] sm:$0xff]
    %v216 = vld [vmem:[#allocation2 + $0x38] sm:$0xff]
    %v217 = vld [vmem:[#allocation2 + $0x40] sm:$0xff]
    %v218 = vld [vmem:[#allocation2 + $0x48] sm:$0xff]
    %v219 = vld [vmem:[#allocation2 + $0x50] sm:$0xff]
    %v220 = vld [vmem:[#allocation2 + $0x58] sm:$0xff]
    %v221 = vld [vmem:[#allocation2 + $0x60] sm:$0xff]
    %v222 = vld [vmem:[#allocation2 + $0x68] sm:$0xff]
    %v223 = vld [vmem:[#allocation2 + $0x70] sm:$0xff]
    %v224 = vld [vmem:[#allocation2 + $0x78] sm:$0xff]
    %v225 = vld [vmem:[#allocation2 + $0x80] sm:$0xff]
    %v226 = vld [vmem:[#allocation2 + $0x88] sm:$0xff]
    %v227 = vld [vmem:[%s1] sm:$0xff]
    %v228 = vld [vmem:[%s1 + $0x8] sm:$0xf]
    %v229 = vld [vmem:[%s3] sm:$0x7]
    %v230 = vperm.slane %v229, 0
    %vm231 = vcmask 97280
    %v233 = vsel %vm231, %v209, 0
    %v236 = vsel %vm231, %v210, 0
    %v239 = vsel %vm231, %v211, 0
    %v242 = vsel %vm231, %v212, 0
    %v245 = vsel %vm231, %v213, 0
    %v248 = vsel %vm231, %v214, 0
    %v251 = vsel %vm231, %v215, 0
    %v254 = vsel %vm231, %v216, 0
    %v257 = vsel %vm231, %v217, 0
    %v260 = vsel %vm231, %v218, 0
    %v263 = vsel %vm231, %v219, 0
    %v266 = vsel %vm231, %v220, 0
    %v269 = vsel %vm231, %v221, 0
    %v272 = vsel %vm231, %v222, 0
    %v275 = vsel %vm231, %v223, 0
    %v278 = vsel %vm231, %v224, 0
    %v281 = vsel %vm231, %v225, 0
    %v284 = vsel %vm231, %v226, 0
    %vm286 = vcmask 1043456
    %v288 = vsel %vm286, %v228, 0
    %290 = vmatpush.msra.mxu0 0.0
    %291 = vmatpush.msra.mxu0 0.0
    %292 = vmatpush.msra.mxu0 0.0
    %293 = vmatpush.msra.mxu0 0.0
    %294 = vmatpush.msra.mxu0 0.0
    %295 = vmatpush.msra.mxu0 0.0
    %296 = vmatpush.msra.mxu0 0.0
    %297 = vmatpush.msra.mxu0 0.0
    %298 = vmatpush.msra.mxu0 0.0
    %299 = vmatpush.msra.mxu0 0.0
    %300 = vmatpush.msra.mxu0 0.0
    %301 = vmatpush.msra.mxu0 0.0
    %302 = vmatpush.msra.mxu0 0.0
    %303 = vmatpush.msra.mxu0 0.0
    %304 = vmatpush.msra.mxu0 %v288
    %305 = vmatpush.msra.mxu0 %v227
    %306 = vmatmul.f32.gmra.mxu0 %v233
    %v307 = vpop.f32.mrf.mxu0
    %v308 = vadd.f32 %v230, %v307
    %309 = vmatmul.f32.gmra.mxu0 %v236
    %v310 = vpop.f32.mrf.mxu0
    %v311 = vadd.f32 %v230, %v310
    %312 = vmatmul.f32.gmra.mxu0 %v239
    %v313 = vpop.f32.mrf.mxu0
    %v314 = vadd.f32 %v230, %v313
    %315 = vmatmul.f32.gmra.mxu0 %v242
    %v316 = vpop.f32.mrf.mxu0
    %v317 = vadd.f32 %v230, %v316
    %318 = vmatmul.f32.gmra.mxu0 %v245
    %v319 = vpop.f32.mrf.mxu0
    %v320 = vadd.f32 %v230, %v319
    %321 = vmatmul.f32.gmra.mxu0 %v248
    %v322 = vpop.f32.mrf.mxu0
    %v323 = vadd.f32 %v230, %v322
    %324 = vmatmul.f32.gmra.mxu0 %v251
    %v325 = vpop.f32.mrf.mxu0
    %v326 = vadd.f32 %v230, %v325
    %327 = vmatmul.f32.gmra.mxu0 %v254
    %v328 = vpop.f32.mrf.mxu0
    %v329 = vadd.f32 %v230, %v328
    %330 = vmatmul.f32.gmra.mxu0 %v257
    %v331 = vpop.f32.mrf.mxu0
    %v332 = vadd.f32 %v230, %v331
    %333 = vmatmul.f32.gmra.mxu0 %v260
    %v334 = vpop.f32.mrf.mxu0
    %v335 = vadd.f32 %v230, %v334
    %336 = vmatmul.f32.gmra.mxu0 %v263
    %v337 = vpop.f32.mrf.mxu0
    %v338 = vadd.f32 %v230, %v337
    %339 = vmatmul.f32.gmra.mxu0 %v266
    %v340 = vpop.f32.mrf.mxu0
    %v341 = vadd.f32 %v230, %v340
    %342 = vmatmul.f32.gmra.mxu0 %v269
    %v343 = vpop.f32.mrf.mxu0
    %v344 = vadd.f32 %v230, %v343
    %345 = vmatmul.f32.gmra.mxu0 %v272
    %v346 = vpop.f32.mrf.mxu0
    %v347 = vadd.f32 %v230, %v346
    %348 = vmatmul.f32.gmra.mxu0 %v275
    %v349 = vpop.f32.mrf.mxu0
    %v350 = vadd.f32 %v230, %v349
    %351 = vmatmul.f32.gmra.mxu0 %v278
    %v352 = vpop.f32.mrf.mxu0
    %v353 = vadd.f32 %v230, %v352
    %354 = vmatmul.f32.gmra.mxu0 %v281
    %v355 = vpop.f32.mrf.mxu0
    %v356 = vadd.f32 %v230, %v355
    %357 = vmatmul.f32.gmra.mxu0 %v284
    %v358 = vpop.f32.mrf.mxu0
    %v359 = vadd.f32 %v230, %v358
    %360 = vdwg.mxu0
    %v361 = vmax.f32 %v308, 0.0
    %v362 = vmax.f32 %v311, 0.0
    %v363 = vmax.f32 %v314, 0.0
    %v364 = vmax.f32 %v317, 0.0
    %v365 = vmax.f32 %v320, 0.0
    %v366 = vmax.f32 %v323, 0.0
    %v367 = vmax.f32 %v326, 0.0
    %v368 = vmax.f32 %v329, 0.0
    %v369 = vmax.f32 %v332, 0.0
    %v370 = vmax.f32 %v335, 0.0
    %v371 = vmax.f32 %v338, 0.0
    %v372 = vmax.f32 %v341, 0.0
    %v373 = vmax.f32 %v344, 0.0
    %v374 = vmax.f32 %v347, 0.0
    %v375 = vmax.f32 %v350, 0.0
    %v376 = vmax.f32 %v353, 0.0
    %v377 = vmax.f32 %v356, 0.0
    %v378 = vmax.f32 %v359, 0.0
    %v379 = vperm.slane %v229, 1
    %v380 = vmul.f32 %v361, %v379
    %v381 = vmul.f32 %v362, %v379
    %v382 = vmul.f32 %v363, %v379
    %v383 = vmul.f32 %v364, %v379
    %v384 = vmul.f32 %v365, %v379
    %v385 = vmul.f32 %v366, %v379
    %v386 = vmul.f32 %v367, %v379
    %v387 = vmul.f32 %v368, %v379
    %v388 = vmul.f32 %v369, %v379
    %v389 = vmul.f32 %v370, %v379
    %v390 = vmul.f32 %v371, %v379
    %v391 = vmul.f32 %v372, %v379
    %v392 = vmul.f32 %v373, %v379
    %v393 = vmul.f32 %v374, %v379
    %v394 = vmul.f32 %v375, %v379
    %v395 = vmul.f32 %v376, %v379
    %v396 = vmul.f32 %v377, %v379
    %v397 = vmul.f32 %v378, %v379
    %v398 = vperm.slane %v229, 2
    %v399 = vadd.f32 %v380, %v398
    %v400 = vadd.f32 %v381, %v398
    %v401 = vadd.f32 %v382, %v398
    %v402 = vadd.f32 %v383, %v398
    %v403 = vadd.f32 %v384, %v398
    %v404 = vadd.f32 %v385, %v398
    %v405 = vadd.f32 %v386, %v398
    %v406 = vadd.f32 %v387, %v398
    %v407 = vadd.f32 %v388, %v398
    %v408 = vadd.f32 %v389, %v398
    %v409 = vadd.f32 %v390, %v398
    %v410 = vadd.f32 %v391, %v398
    %v411 = vadd.f32 %v392, %v398
    %v412 = vadd.f32 %v393, %v398
    %v413 = vadd.f32 %v394, %v398
    %v414 = vadd.f32 %v395, %v398
    %v415 = vadd.f32 %v396, %v398
    %v416 = vadd.f32 %v397, %v398
    %vm417 = vcmask 64512
    %418 = vst.msk [vmem:[#allocation2] sm:$0xff] %vm417, 0.0
    %419 = vst.msk [vmem:[#allocation2 + $0x8] sm:$0xff] %vm417, 0.0
    %420 = vst.msk [vmem:[#allocation2 + $0x10] sm:$0xff] %vm417, 0.0
    %421 = vst.msk [vmem:[#allocation2 + $0x18] sm:$0xff] %vm417, 0.0
    %422 = vst.msk [vmem:[#allocation2 + $0x20] sm:$0xff] %vm417, %v399
    %423 = vst.msk [vmem:[#allocation2 + $0x28] sm:$0xff] %vm417, %v400
    %424 = vst.msk [vmem:[#allocation2 + $0x30] sm:$0xff] %vm417, %v401
    %425 = vst.msk [vmem:[#allocation2 + $0x38] sm:$0xff] %vm417, %v402
    %426 = vst.msk [vmem:[#allocation2 + $0x40] sm:$0xff] %vm417, %v403
    %427 = vst.msk [vmem:[#allocation2 + $0x48] sm:$0xff] %vm417, %v404
    %428 = vst.msk [vmem:[#allocation2 + $0x50] sm:$0xff] %vm417, %v405
    %429 = vst.msk [vmem:[#allocation2 + $0x58] sm:$0xff] %vm417, %v406
    %430 = vst.msk [vmem:[#allocation2 + $0x60] sm:$0xff] %vm417, %v407
    %431 = vst.msk [vmem:[#allocation2 + $0x68] sm:$0xff] %vm417, %v408
    %432 = vst.msk [vmem:[#allocation2 + $0x70] sm:$0xff] %vm417, %v409
    %433 = vst.msk [vmem:[#allocation2 + $0x78] sm:$0xff] %vm417, %v410
    %434 = vst.msk [vmem:[#allocation2 + $0x80] sm:$0xff] %vm417, %v411
    %435 = vst.msk [vmem:[#allocation2 + $0x88] sm:$0xff] %vm417, %v412
    %436 = vst.msk [vmem:[#allocation2 + $0x90] sm:$0xff] %vm417, %v413
    %437 = vst.msk [vmem:[#allocation2 + $0x98] sm:$0xff] %vm417, %v414
    %438 = vst.msk [vmem:[#allocation2 + $0xa0] sm:$0xff] %vm417, %v415
    %439 = vst.msk [vmem:[#allocation2 + $0xa8] sm:$0xff] %vm417, %v416
    %vm440 = vcmask 130112
    %441 = vst.msk [vmem:[#allocation2] sm:$0xff] %vm440, 0.0
    %442 = vst.msk [vmem:[#allocation2 + $0x8] sm:$0xff] %vm440, 0.0
    %443 = vst.msk [vmem:[#allocation2 + $0xa0] sm:$0xff] %vm440, 0.0
    %444 = vst.msk [vmem:[#allocation2 + $0xa8] sm:$0xff] %vm440, 0.0
    %463 = vrot.lane.b32.xlu0 %v399, 8
    %v464 = vpop.permute.xlu0 %463
    %465 = vrot.lane.b32.xlu0 %v400, 8
    %v466 = vpop.permute.xlu0 %465
    %467 = vrot.lane.b32.xlu0 %v401, 8
    %v468 = vpop.permute.xlu0 %467
    %469 = vrot.lane.b32.xlu0 %v402, 8
    %v470 = vpop.permute.xlu0 %469
    %471 = vrot.lane.b32.xlu0 %v403, 8
    %v472 = vpop.permute.xlu0 %471
    %473 = vrot.lane.b32.xlu0 %v404, 8
    %v474 = vpop.permute.xlu0 %473
    %475 = vrot.lane.b32.xlu0 %v405, 8
    %v476 = vpop.permute.xlu0 %475
    %477 = vrot.lane.b32.xlu0 %v406, 8
    %v478 = vpop.permute.xlu0 %477
    %479 = vrot.lane.b32.xlu0 %v407, 8
    %v480 = vpop.permute.xlu0 %479
    %481 = vrot.lane.b32.xlu0 %v408, 8
    %v482 = vpop.permute.xlu0 %481
    %483 = vrot.lane.b32.xlu0 %v409, 8
    %v484 = vpop.permute.xlu0 %483
    %485 = vrot.lane.b32.xlu0 %v410, 8
    %v486 = vpop.permute.xlu0 %485
    %487 = vrot.lane.b32.xlu0 %v411, 8
    %v488 = vpop.permute.xlu0 %487
    %489 = vrot.lane.b32.xlu0 %v412, 8
    %v490 = vpop.permute.xlu0 %489
    %491 = vrot.lane.b32.xlu0 %v413, 8
    %v492 = vpop.permute.xlu0 %491
    %493 = vrot.lane.b32.xlu0 %v414, 8
    %v494 = vpop.permute.xlu0 %493
    %495 = vrot.lane.b32.xlu0 %v415, 8
    %v496 = vpop.permute.xlu0 %495
    %497 = vrot.lane.b32.xlu0 %v416, 8
    %v498 = vpop.permute.xlu0 %497
    %517 = vst.msk [vmem:[#allocation2 + $0x10] sm:$0xff] %vm440, %v464
    %518 = vst.msk [vmem:[#allocation2 + $0x18] sm:$0xff] %vm440, %v466
    %519 = vst.msk [vmem:[#allocation2 + $0x20] sm:$0xff] %vm440, %v468
    %520 = vst.msk [vmem:[#allocation2 + $0x28] sm:$0xff] %vm440, %v470
    %521 = vst.msk [vmem:[#allocation2 + $0x30] sm:$0xff] %vm440, %v472
    %522 = vst.msk [vmem:[#allocation2 + $0x38] sm:$0xff] %vm440, %v474
    %523 = vst.msk [vmem:[#allocation2 + $0x40] sm:$0xff] %vm440, %v476
    %524 = vst.msk [vmem:[#allocation2 + $0x48] sm:$0xff] %vm440, %v478
    %525 = vst.msk [vmem:[#allocation2 + $0x50] sm:$0xff] %vm440, %v480
    %526 = vst.msk [vmem:[#allocation2 + $0x58] sm:$0xff] %vm440, %v482
    %527 = vst.msk [vmem:[#allocation2 + $0x60] sm:$0xff] %vm440, %v484
    %528 = vst.msk [vmem:[#allocation2 + $0x68] sm:$0xff] %vm440, %v486
    %529 = vst.msk [vmem:[#allocation2 + $0x70] sm:$0xff] %vm440, %v488
    %530 = vst.msk [vmem:[#allocation2 + $0x78] sm:$0xff] %vm440, %v490
    %531 = vst.msk [vmem:[#allocation2 + $0x80] sm:$0xff] %vm440, %v492
    %532 = vst.msk [vmem:[#allocation2 + $0x88] sm:$0xff] %vm440, %v494
    %533 = vst.msk [vmem:[#allocation2 + $0x90] sm:$0xff] %vm440, %v496
    %534 = vst.msk [vmem:[#allocation2 + $0x98] sm:$0xff] %vm440, %v498
    %vm535 = vcmask 195712
    %536 = vst.msk [vmem:[#allocation2 + $0x90] sm:$0xff] %vm535, 0.0
    %537 = vst.msk [vmem:[#allocation2 + $0x98] sm:$0xff] %vm535, 0.0
    %538 = vst.msk [vmem:[#allocation2 + $0xa0] sm:$0xff] %vm535, 0.0
    %539 = vst.msk [vmem:[#allocation2 + $0xa8] sm:$0xff] %vm535, 0.0
    %540 = vrot.lane.b32.xlu0 %v399, 16
    %v541 = vpop.permute.xlu0 %540
    %542 = vrot.lane.b32.xlu0 %v400, 16
    %v543 = vpop.permute.xlu0 %542
    %544 = vrot.lane.b32.xlu0 %v401, 16
    %v545 = vpop.permute.xlu0 %544
    %546 = vrot.lane.b32.xlu0 %v402, 16
    %v547 = vpop.permute.xlu0 %546
    %548 = vrot.lane.b32.xlu0 %v403, 16
    %v549 = vpop.permute.xlu0 %548
    %550 = vrot.lane.b32.xlu0 %v404, 16
    %v551 = vpop.permute.xlu0 %550
    %552 = vrot.lane.b32.xlu0 %v405, 16
    %v553 = vpop.permute.xlu0 %552
    %554 = vrot.lane.b32.xlu0 %v406, 16
    %v555 = vpop.permute.xlu0 %554
    %556 = vrot.lane.b32.xlu0 %v407, 16
    %v557 = vpop.permute.xlu0 %556
    %558 = vrot.lane.b32.xlu0 %v408, 16
    %v559 = vpop.permute.xlu0 %558
    %560 = vrot.lane.b32.xlu0 %v409, 16
    %v561 = vpop.permute.xlu0 %560
    %562 = vrot.lane.b32.xlu0 %v410, 16
    %v563 = vpop.permute.xlu0 %562
    %564 = vrot.lane.b32.xlu0 %v411, 16
    %v565 = vpop.permute.xlu0 %564
    %566 = vrot.lane.b32.xlu0 %v412, 16
    %v567 = vpop.permute.xlu0 %566
    %568 = vrot.lane.b32.xlu0 %v413, 16
    %v569 = vpop.permute.xlu0 %568
    %570 = vrot.lane.b32.xlu0 %v414, 16
    %v571 = vpop.permute.xlu0 %570
    %572 = vrot.lane.b32.xlu0 %v415, 16
    %v573 = vpop.permute.xlu0 %572
    %574 = vrot.lane.b32.xlu0 %v416, 16
    %v575 = vpop.permute.xlu0 %574
    %594 = vst.msk [vmem:[#allocation2] sm:$0xff] %vm535, %v541
    %595 = vst.msk [vmem:[#allocation2 + $0x8] sm:$0xff] %vm535, %v543
    %596 = vst.msk [vmem:[#allocation2 + $0x10] sm:$0xff] %vm535, %v545
    %597 = vst.msk [vmem:[#allocation2 + $0x18] sm:$0xff] %vm535, %v547
    %598 = vst.msk [vmem:[#allocation2 + $0x20] sm:$0xff] %vm535, %v549
    %599 = vst.msk [vmem:[#allocation2 + $0x28] sm:$0xff] %vm535, %v551
    %600 = vst.msk [vmem:[#allocation2 + $0x30] sm:$0xff] %vm535, %v553
    %601 = vst.msk [vmem:[#allocation2 + $0x38] sm:$0xff] %vm535, %v555
    %602 = vst.msk [vmem:[#allocation2 + $0x40] sm:$0xff] %vm535, %v557
    %603 = vst.msk [vmem:[#allocation2 + $0x48] sm:$0xff] %vm535, %v559
    %604 = vst.msk [vmem:[#allocation2 + $0x50] sm:$0xff] %vm535, %v561
    %605 = vst.msk [vmem:[#allocation2 + $0x58] sm:$0xff] %vm535, %v563
    %606 = vst.msk [vmem:[#allocation2 + $0x60] sm:$0xff] %vm535, %v565
    %607 = vst.msk [vmem:[#allocation2 + $0x68] sm:$0xff] %vm535, %v567
    %608 = vst.msk [vmem:[#allocation2 + $0x70] sm:$0xff] %vm535, %v569
    %609 = vst.msk [vmem:[#allocation2 + $0x78] sm:$0xff] %vm535, %v571
    %610 = vst.msk [vmem:[#allocation2 + $0x80] sm:$0xff] %vm535, %v573
    %611 = vst.msk [vmem:[#allocation2 + $0x88] sm:$0xff] %vm535, %v575
    %v612 = vld [vmem:[#allocation2] sm:$0xff]
    %v613 = vld [vmem:[#allocation2 + $0x8] sm:$0xff]
    %v614 = vld [vmem:[#allocation2 + $0x10] sm:$0xff]
    %v615 = vld [vmem:[#allocation2 + $0x18] sm:$0xff]
    %v616 = vld [vmem:[#allocation2 + $0x20] sm:$0xff]
    %v617 = vld [vmem:[#allocation2 + $0x28] sm:$0xff]
    %v618 = vld [vmem:[#allocation2 + $0x30] sm:$0xff]
    %v619 = vld [vmem:[#allocation2 + $0x38] sm:$0xff]
    %v620 = vld [vmem:[#allocation2 + $0x40] sm:$0xff]
    %v621 = vld [vmem:[#allocation2 + $0x48] sm:$0xff]
    %v622 = vld [vmem:[#allocation2 + $0x50] sm:$0xff]
    %v623 = vld [vmem:[#allocation2 + $0x58] sm:$0xff]
    %v624 = vld [vmem:[#allocation2 + $0x60] sm:$0xff]
    %v625 = vld [vmem:[#allocation2 + $0x68] sm:$0xff]
    %v626 = vld [vmem:[#allocation2 + $0x70] sm:$0xff]
    %v627 = vld [vmem:[#allocation2 + $0x78] sm:$0xff]
    %v628 = vld [vmem:[#allocation2 + $0x80] sm:$0xff]
    %v629 = vld [vmem:[#allocation2 + $0x88] sm:$0xff]
    %v630 = vld [vmem:[#allocation2 + $0x90] sm:$0xff]
    %v631 = vld [vmem:[#allocation2 + $0x98] sm:$0xff]
    %v632 = vld [vmem:[#allocation2 + $0xa0] sm:$0xff]
    %v633 = vld [vmem:[#allocation2 + $0xa8] sm:$0xff]
    %v634 = vld [vmem:[%s2] sm:$0xff]
    %v635 = vld [vmem:[%s2 + $0x8] sm:$0xff]
    %v636 = vld [vmem:[%s2 + $0x10] sm:$0xff]
    %s637 = scalar_lea.vmem %s3, 4
    %v638 = vld [vmem:[%s637] sm:$0x7]
    %v639 = vperm.slane %v638, 0
    %vm640 = vcmask 195584
    %v642 = vsel %vm640, %v612, 0
    %v645 = vsel %vm640, %v613, 0
    %v648 = vsel %vm640, %v614, 0
    %v651 = vsel %vm640, %v615, 0
    %v654 = vsel %vm640, %v616, 0
    %v657 = vsel %vm640, %v617, 0
    %v660 = vsel %vm640, %v618, 0
    %v663 = vsel %vm640, %v619, 0
    %v666 = vsel %vm640, %v620, 0
    %v669 = vsel %vm640, %v621, 0
    %v672 = vsel %vm640, %v622, 0
    %v675 = vsel %vm640, %v623, 0
    %v678 = vsel %vm640, %v624, 0
    %v681 = vsel %vm640, %v625, 0
    %v684 = vsel %vm640, %v626, 0
    %v687 = vsel %vm640, %v627, 0
    %v690 = vsel %vm640, %v628, 0
    %v693 = vsel %vm640, %v629, 0
    %v696 = vsel %vm640, %v630, 0
    %v699 = vsel %vm640, %v631, 0
    %v702 = vsel %vm640, %v632, 0
    %v705 = vsel %vm640, %v633, 0
    %707 = vmatpush.msra.mxu0 0.0
    %708 = vmatpush.msra.mxu0 0.0
    %709 = vmatpush.msra.mxu0 0.0
    %710 = vmatpush.msra.mxu0 0.0
    %711 = vmatpush.msra.mxu0 0.0
    %712 = vmatpush.msra.mxu0 0.0
    %713 = vmatpush.msra.mxu0 0.0
    %714 = vmatpush.msra.mxu0 0.0
    %715 = vmatpush.msra.mxu0 0.0
    %716 = vmatpush.msra.mxu0 0.0
    %717 = vmatpush.msra.mxu0 0.0
    %718 = vmatpush.msra.mxu0 0.0
    %719 = vmatpush.msra.mxu0 0.0
    %720 = vmatpush.msra.mxu0 %v636
    %721 = vmatpush.msra.mxu0 %v635
    %722 = vmatpush.msra.mxu0 %v634
    %723 = vmatmul.f32.gmra.mxu0 %v642
    %v724 = vpop.f32.mrf.mxu0
    %v725 = vadd.f32 %v639, %v724
    %726 = vmatmul.f32.gmra.mxu0 %v645
    %v727 = vpop.f32.mrf.mxu0
    %v728 = vadd.f32 %v639, %v727
    %729 = vmatmul.f32.gmra.mxu0 %v648
    %v730 = vpop.f32.mrf.mxu0
    %v731 = vadd.f32 %v639, %v730
    %732 = vmatmul.f32.gmra.mxu0 %v651
    %v733 = vpop.f32.mrf.mxu0
    %v734 = vadd.f32 %v639, %v733
    %735 = vmatmul.f32.gmra.mxu0 %v654
    %v736 = vpop.f32.mrf.mxu0
    %v737 = vadd.f32 %v639, %v736
    %738 = vmatmul.f32.gmra.mxu0 %v657
    %v739 = vpop.f32.mrf.mxu0
    %v740 = vadd.f32 %v639, %v739
    %741 = vmatmul.f32.gmra.mxu0 %v660
    %v742 = vpop.f32.mrf.mxu0
    %v743 = vadd.f32 %v639, %v742
    %744 = vmatmul.f32.gmra.mxu0 %v663
    %v745 = vpop.f32.mrf.mxu0
    %v746 = vadd.f32 %v639, %v745
    %747 = vmatmul.f32.gmra.mxu0 %v666
    %v748 = vpop.f32.mrf.mxu0
    %v749 = vadd.f32 %v639, %v748
    %750 = vmatmul.f32.gmra.mxu0 %v669
    %v751 = vpop.f32.mrf.mxu0
    %v752 = vadd.f32 %v639, %v751
    %753 = vmatmul.f32.gmra.mxu0 %v672
    %v754 = vpop.f32.mrf.mxu0
    %v755 = vadd.f32 %v639, %v754
    %756 = vmatmul.f32.gmra.mxu0 %v675
    %v757 = vpop.f32.mrf.mxu0
    %v758 = vadd.f32 %v639, %v757
    %759 = vmatmul.f32.gmra.mxu0 %v678
    %v760 = vpop.f32.mrf.mxu0
    %v761 = vadd.f32 %v639, %v760
    %762 = vmatmul.f32.gmra.mxu0 %v681
    %v763 = vpop.f32.mrf.mxu0
    %v764 = vadd.f32 %v639, %v763
    %765 = vmatmul.f32.gmra.mxu0 %v684
    %v766 = vpop.f32.mrf.mxu0
    %v767 = vadd.f32 %v639, %v766
    %768 = vmatmul.f32.gmra.mxu0 %v687
    %v769 = vpop.f32.mrf.mxu0
    %v770 = vadd.f32 %v639, %v769
    %771 = vmatmul.f32.gmra.mxu0 %v690
    %v772 = vpop.f32.mrf.mxu0
    %v773 = vadd.f32 %v639, %v772
    %774 = vmatmul.f32.gmra.mxu0 %v693
    %v775 = vpop.f32.mrf.mxu0
    %v776 = vadd.f32 %v639, %v775
    %777 = vmatmul.f32.gmra.mxu0 %v696
    %v778 = vpop.f32.mrf.mxu0
    %v779 = vadd.f32 %v639, %v778
    %780 = vmatmul.f32.gmra.mxu0 %v699
    %v781 = vpop.f32.mrf.mxu0
    %v782 = vadd.f32 %v639, %v781
    %783 = vmatmul.f32.gmra.mxu0 %v702
    %v784 = vpop.f32.mrf.mxu0
    %v785 = vadd.f32 %v639, %v784
    %786 = vmatmul.f32.gmra.mxu0 %v705
    %v787 = vpop.f32.mrf.mxu0
    %v788 = vadd.f32 %v639, %v787
    %789 = vdwg.mxu0
    %v790 = vmax.f32 %v725, 0.0
    %v791 = vmax.f32 %v728, 0.0
    %v792 = vmax.f32 %v731, 0.0
    %v793 = vmax.f32 %v734, 0.0
    %v794 = vmax.f32 %v737, 0.0
    %v795 = vmax.f32 %v740, 0.0
    %v796 = vmax.f32 %v743, 0.0
    %v797 = vmax.f32 %v746, 0.0
    %v798 = vmax.f32 %v749, 0.0
    %v799 = vmax.f32 %v752, 0.0
    %v800 = vmax.f32 %v755, 0.0
    %v801 = vmax.f32 %v758, 0.0
    %v802 = vmax.f32 %v761, 0.0
    %v803 = vmax.f32 %v764, 0.0
    %v804 = vmax.f32 %v767, 0.0
    %v805 = vmax.f32 %v770, 0.0
    %v806 = vmax.f32 %v773, 0.0
    %v807 = vmax.f32 %v776, 0.0
    %v808 = vmax.f32 %v779, 0.0
    %v809 = vmax.f32 %v782, 0.0
    %v810 = vmax.f32 %v785, 0.0
    %v811 = vmax.f32 %v788, 0.0
    %v812 = vperm.slane %v638, 1
    %v813 = vmul.f32 %v790, %v812
    %v814 = vmul.f32 %v791, %v812
    %v815 = vmul.f32 %v792, %v812
    %v816 = vmul.f32 %v793, %v812
    %v817 = vmul.f32 %v794, %v812
    %v818 = vmul.f32 %v795, %v812
    %v819 = vmul.f32 %v796, %v812
    %v820 = vmul.f32 %v797, %v812
    %v821 = vmul.f32 %v798, %v812
    %v822 = vmul.f32 %v799, %v812
    %v823 = vmul.f32 %v800, %v812
    %v824 = vmul.f32 %v801, %v812
    %v825 = vmul.f32 %v802, %v812
    %v826 = vmul.f32 %v803, %v812
    %v827 = vmul.f32 %v804, %v812
    %v828 = vmul.f32 %v805, %v812
    %v829 = vmul.f32 %v806, %v812
    %v830 = vmul.f32 %v807, %v812
    %v831 = vmul.f32 %v808, %v812
    %v832 = vmul.f32 %v809, %v812
    %v833 = vmul.f32 %v810, %v812
    %v834 = vmul.f32 %v811, %v812
    %v835 = vperm.slane %v638, 2
    %v836 = vadd.f32 %v813, %v835
    %v837 = vadd.f32 %v814, %v835
    %v838 = vadd.f32 %v815, %v835
    %v839 = vadd.f32 %v816, %v835
    %v840 = vadd.f32 %v817, %v835
    %v841 = vadd.f32 %v818, %v835
    %v842 = vadd.f32 %v819, %v835
    %v843 = vadd.f32 %v820, %v835
    %v844 = vadd.f32 %v821, %v835
    %v845 = vadd.f32 %v822, %v835
    %v846 = vadd.f32 %v823, %v835
    %v847 = vadd.f32 %v824, %v835
    %v848 = vadd.f32 %v825, %v835
    %v849 = vadd.f32 %v826, %v835
    %v850 = vadd.f32 %v827, %v835
    %v851 = vadd.f32 %v828, %v835
    %v852 = vadd.f32 %v829, %v835
    %v853 = vadd.f32 %v830, %v835
    %v854 = vadd.f32 %v831, %v835
    %v855 = vadd.f32 %v832, %v835
    %v856 = vadd.f32 %v833, %v835
    %v857 = vadd.f32 %v834, %v835
    %858 = vst.msk [vmem:[#allocation3] sm:$0xff] %vm417, %v836
    %860 = vrot.lane.b32.xlu0 %v837, 8
    %v861 = vpop.permute.xlu0 %860
    %863 = vst.msk [vmem:[#allocation3] sm:$0xff] %vm440, %v861
    %865 = vrot.lane.b32.xlu0 %v838, 16
    %v866 = vpop.permute.xlu0 %865
    %868 = vst.msk [vmem:[#allocation3] sm:$0xff] %vm535, %v866
    %870 = vrot.lane.b32.xlu0 %v839, 24
    %v871 = vpop.permute.xlu0 %870
    %vm873 = vcmask 261312
    %874 = vst.msk [vmem:[#allocation3] sm:$0xff] %vm873, %v871
    %876 = vrot.lane.b32.xlu0 %v840, 32
    %v877 = vpop.permute.xlu0 %876
    %vm879 = vcmask 326912
    %880 = vst.msk [vmem:[#allocation3] sm:$0xff] %vm879, %v877
    %882 = vrot.lane.b32.xlu0 %v841, 40
    %v883 = vpop.permute.xlu0 %882
    %vm885 = vcmask 392512
    %886 = vst.msk [vmem:[#allocation3] sm:$0xff] %vm885, %v883
    %888 = vrot.lane.b32.xlu0 %v842, 48
    %v889 = vpop.permute.xlu0 %888
    %vm891 = vcmask 458112
    %892 = vst.msk [vmem:[#allocation3] sm:$0xff] %vm891, %v889
    %894 = vrot.lane.b32.xlu0 %v843, 56
    %v895 = vpop.permute.xlu0 %894
    %vm897 = vcmask 523712
    %898 = vst.msk [vmem:[#allocation3] sm:$0xff] %vm897, %v895
    %900 = vrot.lane.b32.xlu0 %v844, 64
    %v901 = vpop.permute.xlu0 %900
    %vm903 = vcmask 589312
    %904 = vst.msk [vmem:[#allocation3] sm:$0xff] %vm903, %v901
    %906 = vrot.lane.b32.xlu0 %v845, 72
    %v907 = vpop.permute.xlu0 %906
    %vm909 = vcmask 654912
    %910 = vst.msk [vmem:[#allocation3] sm:$0xff] %vm909, %v907
    %912 = vrot.lane.b32.xlu0 %v846, 80
    %v913 = vpop.permute.xlu0 %912
    %vm915 = vcmask 720512
    %916 = vst.msk [vmem:[#allocation3] sm:$0xff] %vm915, %v913
    %918 = vrot.lane.b32.xlu0 %v847, 88
    %v919 = vpop.permute.xlu0 %918
    %vm921 = vcmask 786112
    %922 = vst.msk [vmem:[#allocation3] sm:$0xff] %vm921, %v919
    %924 = vrot.lane.b32.xlu0 %v848, 96
    %v925 = vpop.permute.xlu0 %924
    %vm927 = vcmask 851712
    %928 = vst.msk [vmem:[#allocation3] sm:$0xff] %vm927, %v925
    %930 = vrot.lane.b32.xlu0 %v849, 104
    %v931 = vpop.permute.xlu0 %930
    %vm933 = vcmask 917312
    %934 = vst.msk [vmem:[#allocation3] sm:$0xff] %vm933, %v931
    %936 = vrot.lane.b32.xlu0 %v850, 112
    %v937 = vpop.permute.xlu0 %936
    %vm939 = vcmask 982912
    %940 = vst.msk [vmem:[#allocation3] sm:$0xff] %vm939, %v937
    %942 = vrot.lane.b32.xlu0 %v851, 120
    %v943 = vpop.permute.xlu0 %942
    %vm945 = vcmask 1048512
    %946 = vst.msk [vmem:[#allocation3] sm:$0xff] %vm945, %v943
    %947 = vst.msk [vmem:[#allocation3 + $0x8] sm:$0xff] %vm417, %v852
    %949 = vrot.lane.b32.xlu0 %v853, 8
    %v950 = vpop.permute.xlu0 %949
    %952 = vst.msk [vmem:[#allocation3 + $0x8] sm:$0xff] %vm440, %v950
    %954 = vrot.lane.b32.xlu0 %v854, 16
    %v955 = vpop.permute.xlu0 %954
    %957 = vst.msk [vmem:[#allocation3 + $0x8] sm:$0xff] %vm535, %v955
    %959 = vrot.lane.b32.xlu0 %v855, 24
    %v960 = vpop.permute.xlu0 %959
    %962 = vst.msk [vmem:[#allocation3 + $0x8] sm:$0xff] %vm873, %v960
    %964 = vrot.lane.b32.xlu0 %v856, 32
    %v965 = vpop.permute.xlu0 %964
    %967 = vst.msk [vmem:[#allocation3 + $0x8] sm:$0xff] %vm879, %v965
    %969 = vrot.lane.b32.xlu0 %v857, 40
    %v970 = vpop.permute.xlu0 %969
    %972 = vst.msk [vmem:[#allocation3 + $0x8] sm:$0xff] %vm885, %v970
    %v973 = vld [vmem:[#allocation3] sm:$0xff]
    %v974 = vld [vmem:[#allocation3 + $0x8] sm:$0xff]
    %v975 = vld [vmem:[%s4] sm:$0xff]
    %v976 = vld [vmem:[%s4 + $0x8] sm:$0xff]
    %v977 = vld [vmem:[%s4 + $0x10] sm:$0xff]
    %v978 = vld [vmem:[%s4 + $0x18] sm:$0xff]
    %v979 = vld [vmem:[%s4 + $0x20] sm:$0xff]
    %v980 = vld [vmem:[%s4 + $0x28] sm:$0xff]
    %v981 = vld [vmem:[%s4 + $0x30] sm:$0xff]
    %v982 = vld [vmem:[%s4 + $0x38] sm:$0xff]
    %v983 = vld [vmem:[%s4 + $0x40] sm:$0xff]
    %v984 = vld [vmem:[%s4 + $0x48] sm:$0xff]
    %v985 = vld [vmem:[%s4 + $0x50] sm:$0xff]
    %v986 = vld [vmem:[%s4 + $0x58] sm:$0xff]
    %v987 = vld [vmem:[%s4 + $0x60] sm:$0xff]
    %v988 = vld [vmem:[%s4 + $0x68] sm:$0xff]
    %v989 = vld [vmem:[%s4 + $0x70] sm:$0xff]
    %v990 = vld [vmem:[%s4 + $0x78] sm:$0xff]
    %v991 = vld [vmem:[%s4 + $0x80] sm:$0xff]
    %v992 = vld [vmem:[%s4 + $0x88] sm:$0xff]
    %v993 = vld [vmem:[%s4 + $0x90] sm:$0xff]
    %v994 = vld [vmem:[%s4 + $0x98] sm:$0xff]
    %v995 = vld [vmem:[%s4 + $0xa0] sm:$0xff]
    %v996 = vld [vmem:[%s4 + $0xa8] sm:$0xff]
    %v997 = vld [vmem:[%s5] sm:$0x1]
    %v999 = vperm.slane %v997, 0
    %vm1001 = vcmask 392192
    %v1003 = vsel %vm1001, %v974, 0
    %1005 = vmatpush.msra.mxu0 %v990
    %1006 = vmatpush.msra.mxu0 %v989
    %1007 = vmatpush.msra.mxu0 %v988
    %1008 = vmatpush.msra.mxu0 %v987
    %1009 = vmatpush.msra.mxu0 %v986
    %1010 = vmatpush.msra.mxu0 %v985
    %1011 = vmatpush.msra.mxu0 %v984
    %1012 = vmatpush.msra.mxu0 %v983
    %1013 = vmatpush.msra.mxu0 %v982
    %1014 = vmatpush.msra.mxu0 %v981
    %1015 = vmatpush.msra.mxu0 %v980
    %1016 = vmatpush.msra.mxu0 %v979
    %1017 = vmatpush.msra.mxu0 %v978
    %1018 = vmatpush.msra.mxu0 %v977
    %1019 = vmatpush.msra.mxu0 %v976
    %1020 = vmatpush.msra.mxu0 %v975
    %1021 = vmatmul.f32.gmra.mxu0 %v973
    %v1022 = vpop.f32.mrf.mxu0
    %v1023 = vadd.f32 %v999, %v1022
    %1024 = vdwg.mxu0
    %1025 = vmatpush.msra.mxu0 0.0
    %1026 = vmatpush.msra.mxu0 0.0
    %1027 = vmatpush.msra.mxu0 0.0
    %1028 = vmatpush.msra.mxu0 0.0
    %1029 = vmatpush.msra.mxu0 0.0
    %1030 = vmatpush.msra.mxu0 0.0
    %1031 = vmatpush.msra.mxu0 0.0
    %1032 = vmatpush.msra.mxu0 0.0
    %1033 = vmatpush.msra.mxu0 0.0
    %1034 = vmatpush.msra.mxu0 0.0
    %1035 = vmatpush.msra.mxu0 %v996
    %1036 = vmatpush.msra.mxu0 %v995
    %1037 = vmatpush.msra.mxu0 %v994
    %1038 = vmatpush.msra.mxu0 %v993
    %1039 = vmatpush.msra.mxu0 %v992
    %1040 = vmatpush.msra.mxu0 %v991
    %1041 = vmatmul.f32.gmra.mxu0 %v1003
    %v1042 = vpop.f32.mrf.mxu0
    %v1043 = vadd.f32 %v1023, %v1042
    %1044 = vdwg.mxu0
    %1045 = vst.msk [vmem:[#allocation4] sm:$0xff] %vm417, %v1043
    // Predicated region
    $region26: #{tpu_custom_call.1} parent=1 // pred_check
      _
    $region27: #{tpu_custom_call.1} parent=1 // pred_check_branch
      %1047 = sbr.rel (0) target = $region29
    $region28: #{tpu_custom_call.1} parent=1 // pred_region
      %1049 = vsyncadd [#allocation5], 0
      %s1051 = sshll.u32 [#allocation4], 4
      %s1052 = int_to_ptr.vmem [resolvable:$true] %s1051
      %s1053 = sshll.u32 %s6, 4
      %s1054 = int_to_ptr.hbm [resolvable:$true] %s1053
      %1056 = dma.vmem_to_hbm [thread:$0]  %s1052, 128, %s1054, [#allocation5]
    $region29: #{tpu_custom_call.1} parent=1 // pred_fallthru
      _
    // Predicated region
    $region30: #{tpu_custom_call.1} parent=1 // pred_check
      _
    $region31: #{tpu_custom_call.1} parent=1 // pred_check_branch
      %1058 = sbr.rel (0) target = $region33
    $region32: #{tpu_custom_call.1} parent=1 // pred_region
      %1060 = dma.done [#allocation5], 128
    $region33: #{tpu_custom_call.1} parent=1 // pred_fallthru
      _
    %1061 = vsyncpa [#allocation5], 1

</llo_original>
